<compile_context>
chip_gen: v5e
topology: v5e:2x2
jax: 0.10.0
libtpu: 0.0.40
codegen_flags: <defaults>
</compile_context>

<pallas_src>
import jax
import jax.numpy as jnp
from jax import lax
from jax.experimental import pallas as pl
from jax.experimental.pallas import tpu as pltpu


# ---------------------------------------------------------------------------
# Static shape plan (all Python ints, derived from the parameter shapes)
# ---------------------------------------------------------------------------
def _build_plan(params, pooling_kernel_size, M, F_in):
    """Per-layer / per-block configs for the lane-dense (f, c)-flattened layout.

    After a MaxPool the feature axis is left *uncompacted*: pooled feature `fo`
    lives at column fo*p*C + c of the next buffer, and the following layer's
    block-Toeplitz weight reads those strided columns (unused columns get zero
    weight rows), so no narrow-lane compaction ever happens inside the kernel.
    """
    layer_cfg, block_cfg = [], []
    T, F, Cin = M, F_in, 1
    Win, stride_f = F_in, 1          # incoming buffer width / column stride per feature
    for block_layers, p in zip(params["blocks"], pooling_kernel_size):
        for (w, _) in block_layers:
            Cout, Cin_w, kh, kw = w.shape
            assert Cin_w == Cin
            layer_cfg.append(dict(T=T, F=F, Cin=Cin, Cout=Cout, kh=kh, kw=kw,
                                  Win=Win, stride_f=stride_f))
            Cin = Cout
            Win, stride_f = F * Cout, Cout            # conv output is (f, c)-flat
        block_cfg.append(dict(T=T, F=F, C=Cin, p=p))
        Win = (F - p + 1) * Cin                        # uncompacted pooled width
        stride_f = p * Cin
        T, F = T // p, F // p
    return layer_cfg, block_cfg, T, F, Cin, Win, stride_f


# ---------------------------------------------------------------------------
# One-time parameter repacking (block-Toeplitz conv weights, (c,f)-major FC rows)
# ---------------------------------------------------------------------------
def _expand_conv_weight(w, F_out, Win, stride_f):
    """[Cout, Cin, kh, kw] -> [kh*Win, F_out*Cout] block-banded matrix.

    Row (dh, col = fin*stride_f + ci), output column (f*Cout + co) holds
    w[co, ci, dh, fin - f + kw - 1] for f-(kw-1) <= fin <= f (causal feature
    padding is implicit: out-of-range taps simply have no weight rows).
    """
    Cout, Cin, kh, kw = w.shape
    wt = jnp.transpose(w, (2, 3, 1, 0))               # [kh, kw, Cin, Cout]
    Wexp = jnp.zeros((kh, Win, F_out, Cout), jnp.float32)
    for f in range(F_out):
        for dw in range(kw):
            fin = f - (kw - 1) + dw
            if fin < 0:
                continue
            col = fin * stride_f
            Wexp = Wexp.at[:, col:col + Cin, f, :].set(wt[:, dw])
    return Wexp.reshape(kh * Win, F_out * Cout)


def _expand_fc_weight(fc_w, Fp, C_last, fc_stride, W_final):
    """FC rows re-indexed to the uncompacted pooled layout.

    fc_w row index is PyTorch's channel-major flatten c*Fp + fo; our final
    activation has pooled feature fo, channel c at column fo*fc_stride + c.
    """
    d_model = fc_w.shape[1]
    src = fc_w.reshape(C_last, Fp, d_model)
    fcw = jnp.zeros((W_final, d_model), jnp.float32)
    for fo in range(Fp):
        col = fo * fc_stride
        fcw = fcw.at[col:col + C_last, :].set(src[:, fo, :])
    return fcw


# ---------------------------------------------------------------------------
# The fused kernel (entire prenet for B_tile batch elements per grid step)
# ---------------------------------------------------------------------------
def _make_fused_kernel(layer_cfg, block_cfg, layers_per_block, b_tile, Mp, d_model):
    n_layers = len(layer_cfg)
    n_blocks = len(block_cfg)

    def kernel(*refs):
        x_ref = refs[0]
        wb = refs[1:1 + 2 * n_layers]
        fcw_ref = refs[1 + 2 * n_layers]
        fcb_ref = refs[2 + 2 * n_layers]
        out_ref = refs[3 + 2 * n_layers]
        scratch = refs[4 + 2 * n_layers:]
        pad_refs = scratch[:n_layers]
        pbuf_refs = scratch[n_layers:n_layers + n_blocks]

        h3 = x_ref[...]                                # [b_tile, M, F_in] lane-dense
        li = 0
        flat = None
        for bi, blk in enumerate(block_cfg):
            y = None
            for j in range(layers_per_block[bi]):
                cfg = layer_cfg[li]
                T, Win, kh = cfg["T"], cfg["Win"], cfg["kh"]
                Nout = cfg["F"] * cfg["Cout"]
                pad_ref = pad_refs[li]                 # [b_tile, T+kh-1, Win]
                w_ref, b_ref = wb[2 * li], wb[2 * li + 1]

                # Causal TIME halo only (feature padding is in the Toeplitz
                # weight).  Re-zeroed every step: it is (kh-1) rows, and a
                # program_id==0 one-shot init would be unsafe under megacore
                # grid splitting (scratch is per-core).
                pad_ref[:, :kh - 1, :] = jnp.zeros(
                    (b_tile, kh - 1, Win), jnp.float32)
                pad_ref[:, kh - 1:, :] = h3

                # kh time-shifted slabs concatenated on the lane axis -> one MXU
                # matmul with K = kh*Win and N = F*Cout (lane-wide output).
                slabs = [pad_ref[:, dh:dh + T, :] for dh in range(kh)]
                patches = jnp.concatenate(slabs, axis=-1)   # [b_tile, T, kh*Win]
                patches = patches.reshape(b_tile * T, kh * Win)
                y = jnp.dot(patches, w_ref[...],
                            preferred_element_type=jnp.float32) + b_ref[...]
                li += 1
                if j + 1 < layers_per_block[bi]:
                    h3 = y.reshape(b_tile, T, Nout)

            # ------- MaxPool2d(p) (stride p, floor mode), lane-dense -----------
            T, F, C, p = blk["T"], blk["F"], blk["C"], blk["p"]
            To = T // p
            pbuf = pbuf_refs[bi]                        # [b_tile*T, F*C]
            pbuf[...] = y
            # time pooling: p strided-sublane reads (T % p == 0, so one stride-p
            # sequence walks every stacked batch element's rows correctly)
            tmax = pbuf[pl.ds(0, b_tile * To, stride=p), :]
            for i in range(1, p):
                tmax = jnp.maximum(tmax, pbuf[pl.ds(i, b_tile * To, stride=p), :])
            # feature pooling: lane-window maxima on the value; the result stays
            # uncompacted (pooled feature fo at column fo*p*C + c) — downstream
            # pre-expanded weights read those strided columns.
            Wv = (F - p + 1) * C
            fmax = tmax[:, :Wv]
            for jj in range(1, p):
                fmax = jnp.maximum(fmax, tmax[:, jj * C:jj * C + Wv])

            if bi + 1 < n_blocks:
                h3 = fmax.reshape(b_tile, To, Wv)
            else:
                flat = fmax                             # [b_tile*Mp, W_final]

        # ---- Linear head: channel-major flatten folded into fcw row order ----
        out = jnp.dot(flat, fcw_ref[...],
                      preferred_element_type=jnp.float32) + fcb_ref[...]
        for bb in range(b_tile):
            out_ref[bb] = out[bb * Mp:(bb + 1) * Mp, :].astype(out_ref.dtype)

    return kernel


# ---------------------------------------------------------------------------
# Wrapper: parameter repacking + the single pallas_call
# ---------------------------------------------------------------------------
def vgg_prenet_forward(x, lengths, params, pooling_kernel_size, b_tile=None):
    """x: [B, M, in_features], lengths: [B] -> ([B, M', d_model], [B])."""
    B, M, F_in = x.shape
    layer_cfg, block_cfg, Mp, Fp, C_last, W_final, fc_stride = _build_plan(
        params, pooling_kernel_size, M, F_in)
    d_model = params["fc_w"].shape[1]
    layers_per_block = [len(bl) for bl in params["blocks"]]

    if b_tile is None:                 # stack batch, but keep grid >= 2 (megacore)
        b_tile = 1
        for d in range(min(B, 8), 0, -1):
            if B % d == 0 and B // d >= 2:
                b_tile = d
                break
    assert B % b_tile == 0
    grid = (B // b_tile,)

    # ---- one-time parameter repacking (tiny; runs as plain XLA ops) ----------
    flat_params = [wb for bl in params["blocks"] for wb in bl]
    flat_wb = []
    for cfg, (w, b) in zip(layer_cfg, flat_params):
        flat_wb.append(_expand_conv_weight(w, cfg["F"], cfg["Win"], cfg["stride_f"]))
        flat_wb.append(jnp.tile(b, cfg["F"]).reshape(
            1, cfg["F"] * cfg["Cout"]).astype(jnp.float32))
    fcw = _expand_fc_weight(params["fc_w"], Fp, C_last, fc_stride, W_final)
    fcb = params["fc_b"].reshape(1, d_model).astype(jnp.float32)

    inputs = [x.astype(jnp.float32)] + flat_wb + [fcw, fcb]

    # Input stays 3-D [B, M, F_in]: lane-dense DMA, no trailing singleton.
    in_specs = [pl.BlockSpec((b_tile, M, F_in), lambda g: (g, 0, 0))]
    for a in inputs[1:]:
        assert a.ndim == 2
        in_specs.append(pl.BlockSpec(a.shape, lambda g: (0, 0)))   # VMEM-resident
    out_specs = pl.BlockSpec((b_tile, Mp, d_model), lambda g: (g, 0, 0))

    scratch_shapes = []
    for cfg in layer_cfg:              # per-layer causal-time-padded buffers
        scratch_shapes.append(pltpu.VMEM(
            (b_tile, cfg["T"] + cfg["kh"] - 1, cfg["Win"]), jnp.float32))
    for blk in block_cfg:              # per-block lane-dense pooling buffers
        scratch_shapes.append(pltpu.VMEM(
            (b_tile * blk["T"], blk["F"] * blk["C"]), jnp.float32))

    kernel = _make_fused_kernel(layer_cfg, block_cfg, layers_per_block,
                                b_tile, Mp, d_model)

    out = pl.pallas_call(
        kernel,
        out_shape=jax.ShapeDtypeStruct((B, Mp, d_model), jnp.float32),
        grid=grid,
        in_specs=in_specs,
        out_specs=out_specs,
        scratch_shapes=scratch_shapes,
        compiler_params=pltpu.CompilerParams(
            dimension_semantics=("parallel",),
            vmem_limit_bytes=64 * 1024 * 1024),
    )(*inputs)

    new_lengths = lengths
    for p in pooling_kernel_size:
        new_lengths = new_lengths // p
    return out, new_lengths


# ---------------------------------------------------------------------------
# Deterministic synthetic parameters (shapes follow the module __init__)
# ---------------------------------------------------------------------------
def init_params(key, in_features, n_channels_per_block, kernel_sizes_per_block,
                pooling_kernel_size, d_model):
    params = {"blocks": []}
    cin = 1
    feat = in_features
    for chans, ks, p in zip(n_channels_per_block, kernel_sizes_per_block,
                            pooling_kernel_size):
        layers = []
        for cout, k in zip(chans, ks):
            key, kwk, kbk = jax.random.split(key, 3)
            w = jax.random.normal(kwk, (cout, cin, k, k), jnp.float32) * 0.1
            b = jax.random.normal(kbk, (cout,), jnp.float32) * 0.1
            layers.append((w, b))
            cin = cout
        params["blocks"].append(layers)
        feat //= p
    fc_in = feat * n_channels_per_block[-1][-1]
    key, kwk, kbk = jax.random.split(key, 3)
    # NOTE: stored as (fc_in, d_model); PyTorch nn.Linear weights are (out, in)
    # and must be transposed when loading real checkpoints.
    params["fc_w"] = jax.random.normal(kwk, (fc_in, d_model), jnp.float32) * 0.1
    params["fc_b"] = jax.random.normal(kbk, (d_model,), jnp.float32) * 0.1
    return params


# ---------------------------------------------------------------------------
# Pure-JAX reference (independent of the Pallas path) for a correctness check
# ---------------------------------------------------------------------------
def reference_forward(x, lengths, params, pooling_kernel_size):
    h = x[:, :, :, None]
    for block_layers, p in zip(params["blocks"], pooling_kernel_size):
        for (w_oihw, b) in block_layers:
            kh, kw = w_oihw.shape[2], w_oihw.shape[3]
            hp = jnp.pad(h, ((0, 0), (kh - 1, 0), (kw - 1, 0), (0, 0)))
            w_hwio = jnp.transpose(w_oihw, (2, 3, 1, 0))
            h = lax.conv_general_dilated(
                hp, w_hwio, window_strides=(1, 1), padding="VALID",
                dimension_numbers=("NHWC", "HWIO", "NHWC"))
            h = h + b[None, None, None, :]
        h = lax.reduce_window(h, -jnp.inf, lax.max,
                              (1, p, p, 1), (1, p, p, 1), "VALID")
        lengths = lengths // p
    B, Mp, Fp, C = h.shape
    h2 = jnp.transpose(h, (0, 1, 3, 2)).reshape(B, Mp, C * Fp)
    out = jnp.einsum("bmk,kn->bmn", h2, params["fc_w"]) + params["fc_b"]
    return out, lengths


if __name__ == "__main__":
    # Module config
    in_features = 16
    n_vgg_blocks = 2
    n_layers_per_block = [2, 2]
    kernel_sizes_per_block = [[3, 3], [3, 3]]
    n_channels_per_block = [[4, 4], [8, 8]]
    pooling_kernel_size = [2, 2]
    d_model = 32

    B, M = 4, 16

    key = jax.random.PRNGKey(0)
    kx, kp = jax.random.split(key, 2)
    x = jax.random.normal(kx, (B, M, in_features), jnp.float32)
    lengths = jnp.array([16, 12, 16, 8], dtype=jnp.int32)

    params = init_params(kp, in_features, n_channels_per_block,
                         kernel_sizes_per_block, pooling_kernel_size, d_model)

    fwd = jax.jit(lambda xx, ll, prm: vgg_prenet_forward(
        xx, ll, prm, pooling_kernel_size))

    out, new_lengths = fwd(x, lengths, params)
    out = jax.block_until_ready(out)
    new_lengths = jax.block_until_ready(new_lengths)

    ref_out, ref_len = reference_forward(x, lengths, params, pooling_kernel_size)

    assert out.shape == (B, M // 4, d_model), out.shape
    assert jnp.array_equal(new_lengths, ref_len), (new_lengths, ref_len)
    assert jnp.allclose(out, ref_out, atol=1e-3, rtol=1e-3), float(
        jnp.max(jnp.abs(out - ref_out)))

    print("KERNEL_OK")
</pallas_src>

<mosaic_0001>
module attributes {stable_mosaic.version = 11 : i64} {
  func.func @kernel(%arg0: i32, %arg1: memref<2x16x16xf32, #tpu.memory_space<vmem>>, %arg2: memref<48x64xf32, #tpu.memory_space<vmem>>, %arg3: memref<1x64xf32, #tpu.memory_space<vmem>>, %arg4: memref<192x64xf32, #tpu.memory_space<vmem>>, %arg5: memref<1x64xf32, #tpu.memory_space<vmem>>, %arg6: memref<180x64xf32, #tpu.memory_space<vmem>>, %arg7: memref<1x64xf32, #tpu.memory_space<vmem>>, %arg8: memref<192x64xf32, #tpu.memory_space<vmem>>, %arg9: memref<1x64xf32, #tpu.memory_space<vmem>>, %arg10: memref<56x32xf32, #tpu.memory_space<vmem>>, %arg11: memref<1x32xf32, #tpu.memory_space<vmem>>, %arg12: memref<2x4x32xf32, #tpu.memory_space<vmem>>, %arg13: memref<2x18x16xf32, #tpu.memory_space<vmem>>, %arg14: memref<2x18x64xf32, #tpu.memory_space<vmem>>, %arg15: memref<2x10x60xf32, #tpu.memory_space<vmem>>, %arg16: memref<2x10x64xf32, #tpu.memory_space<vmem>>, %arg17: memref<32x64xf32, #tpu.memory_space<vmem>>, %arg18: memref<16x64xf32, #tpu.memory_space<vmem>>) attributes {dimension_semantics = [#tpu.dimension_semantics<parallel>], iteration_bounds = array<i64: 2>, scalar_prefetch = 0 : i64, scratch_operands = 6 : i64, tpu.core_type = #tpu.core_type<tc>, window_params = [{transform_indices = @transform_0, window_bounds = array<i64: 2, 16, 16>}, {pipeline_mode = #tpu.pipeline_mode<synchronous>, transform_indices = @transform_1, window_bounds = array<i64: 48, 64>}, {pipeline_mode = #tpu.pipeline_mode<synchronous>, transform_indices = @transform_2, window_bounds = array<i64: 1, 64>}, {pipeline_mode = #tpu.pipeline_mode<synchronous>, transform_indices = @transform_3, window_bounds = array<i64: 192, 64>}, {pipeline_mode = #tpu.pipeline_mode<synchronous>, transform_indices = @transform_4, window_bounds = array<i64: 1, 64>}, {pipeline_mode = #tpu.pipeline_mode<synchronous>, transform_indices = @transform_5, window_bounds = array<i64: 180, 64>}, {pipeline_mode = #tpu.pipeline_mode<synchronous>, transform_indices = @transform_6, window_bounds = array<i64: 1, 64>}, {pipeline_mode = #tpu.pipeline_mode<synchronous>, transform_indices = @transform_7, window_bounds = array<i64: 192, 64>}, {pipeline_mode = #tpu.pipeline_mode<synchronous>, transform_indices = @transform_8, window_bounds = array<i64: 1, 64>}, {pipeline_mode = #tpu.pipeline_mode<synchronous>, transform_indices = @transform_9, window_bounds = array<i64: 56, 32>}, {pipeline_mode = #tpu.pipeline_mode<synchronous>, transform_indices = @transform_10, window_bounds = array<i64: 1, 32>}, {transform_indices = @transform_11, window_bounds = array<i64: 2, 4, 32>}]} {
    %c0 = arith.constant 0 : index
    %c0_0 = arith.constant 0 : index
    %c0_1 = arith.constant 0 : index
    %0 = vector.load %arg1[%c0, %c0_0, %c0_1] : memref<2x16x16xf32, #tpu.memory_space<vmem>>, vector<2x16x16xf32>
    %cst = arith.constant 0.000000e+00 : f32
    %1 = vector.broadcast %cst : f32 to vector<2x2x16xf32>
    %c0_2 = arith.constant 0 : index
    %c0_3 = arith.constant 0 : index
    %c0_4 = arith.constant 0 : index
    %2 = vector.load %arg13[%c0_2, %c0_3, %c0_4] : memref<2x18x16xf32, #tpu.memory_space<vmem>>, vector<2x2x16xf32>
    tpu.vector_store %arg13[%c0_2, %c0_3, %c0_4], %1 {strides = array<i32>} : memref<2x18x16xf32, #tpu.memory_space<vmem>>, vector<2x2x16xf32>,
    %c0_5 = arith.constant 0 : index
    %c2 = arith.constant 2 : index
    %c0_6 = arith.constant 0 : index
    %3 = vector.load %arg13[%c0_5, %c2, %c0_6] : memref<2x18x16xf32, #tpu.memory_space<vmem>>, vector<2x16x16xf32>
    tpu.vector_store %arg13[%c0_5, %c2, %c0_6], %0 {strides = array<i32>} : memref<2x18x16xf32, #tpu.memory_space<vmem>>, vector<2x16x16xf32>,
    %c0_7 = arith.constant 0 : index
    %c0_8 = arith.constant 0 : index
    %c0_9 = arith.constant 0 : index
    %4 = vector.load %arg13[%c0_7, %c0_8, %c0_9] : memref<2x18x16xf32, #tpu.memory_space<vmem>>, vector<2x16x16xf32>
    %c0_10 = arith.constant 0 : index
    %c1 = arith.constant 1 : index
    %c0_11 = arith.constant 0 : index
    %5 = vector.load %arg13[%c0_10, %c1, %c0_11] : memref<2x18x16xf32, #tpu.memory_space<vmem>>, vector<2x16x16xf32>
    %c0_12 = arith.constant 0 : index
    %c2_13 = arith.constant 2 : index
    %c0_14 = arith.constant 0 : index
    %6 = vector.load %arg13[%c0_12, %c2_13, %c0_14] : memref<2x18x16xf32, #tpu.memory_space<vmem>>, vector<2x16x16xf32>
    %7 = tpu.concatenate %4, %5, %6 in 2 : vector<2x16x16xf32>, vector<2x16x16xf32>, vector<2x16x16xf32> -> vector<2x16x48xf32>
    %8 = vector.shape_cast %7 : vector<2x16x48xf32> to vector<32x48xf32>
    %c0_15 = arith.constant 0 : index
    %c0_16 = arith.constant 0 : index
    %9 = vector.load %arg2[%c0_15, %c0_16] : memref<48x64xf32, #tpu.memory_space<vmem>>, vector<48x64xf32>
    %cst_17 = arith.constant dense<0.000000e+00> : vector<32x64xf32>
    %10 = tpu.matmul %8, %9, %cst_17 {dimension_numbers = #tpu.dot_dimension_numbers<[1], [0], [0], [1], [0, 0, 1, 1], [], []>} : vector<32x48xf32>, vector<48x64xf32>, vector<32x64xf32> -> vector<32x64xf32>
    %c0_18 = arith.constant 0 : index
    %c0_19 = arith.constant 0 : index
    %11 = vector.load %arg3[%c0_18, %c0_19] : memref<1x64xf32, #tpu.memory_space<vmem>>, vector<1x64xf32>
    %12 = vector.broadcast %11 : vector<1x64xf32> to vector<32x64xf32>
    %13 = arith.addf %10, %12 : vector<32x64xf32>
    %14 = vector.shape_cast %13 : vector<32x64xf32> to vector<2x16x64xf32>
    %cst_20 = arith.constant 0.000000e+00 : f32
    %15 = vector.broadcast %cst_20 : f32 to vector<2x2x64xf32>
    %c0_21 = arith.constant 0 : index
    %c0_22 = arith.constant 0 : index
    %c0_23 = arith.constant 0 : index
    %16 = vector.load %arg14[%c0_21, %c0_22, %c0_23] : memref<2x18x64xf32, #tpu.memory_space<vmem>>, vector<2x2x64xf32>
    tpu.vector_store %arg14[%c0_21, %c0_22, %c0_23], %15 {strides = array<i32>} : memref<2x18x64xf32, #tpu.memory_space<vmem>>, vector<2x2x64xf32>,
    %c0_24 = arith.constant 0 : index
    %c2_25 = arith.constant 2 : index
    %c0_26 = arith.constant 0 : index
    %17 = vector.load %arg14[%c0_24, %c2_25, %c0_26] : memref<2x18x64xf32, #tpu.memory_space<vmem>>, vector<2x16x64xf32>
    tpu.vector_store %arg14[%c0_24, %c2_25, %c0_26], %14 {strides = array<i32>} : memref<2x18x64xf32, #tpu.memory_space<vmem>>, vector<2x16x64xf32>,
    %c0_27 = arith.constant 0 : index
    %c0_28 = arith.constant 0 : index
    %c0_29 = arith.constant 0 : index
    %18 = vector.load %arg14[%c0_27, %c0_28, %c0_29] : memref<2x18x64xf32, #tpu.memory_space<vmem>>, vector<2x16x64xf32>
    %c0_30 = arith.constant 0 : index
    %c1_31 = arith.constant 1 : index
    %c0_32 = arith.constant 0 : index
    %19 = vector.load %arg14[%c0_30, %c1_31, %c0_32] : memref<2x18x64xf32, #tpu.memory_space<vmem>>, vector<2x16x64xf32>
    %c0_33 = arith.constant 0 : index
    %c2_34 = arith.constant 2 : index
    %c0_35 = arith.constant 0 : index
    %20 = vector.load %arg14[%c0_33, %c2_34, %c0_35] : memref<2x18x64xf32, #tpu.memory_space<vmem>>, vector<2x16x64xf32>
    %21 = tpu.concatenate %18, %19, %20 in 2 : vector<2x16x64xf32>, vector<2x16x64xf32>, vector<2x16x64xf32> -> vector<2x16x192xf32>
    %22 = vector.shape_cast %21 : vector<2x16x192xf32> to vector<32x192xf32>
    %c0_36 = arith.constant 0 : index
    %c0_37 = arith.constant 0 : index
    %23 = vector.load %arg4[%c0_36, %c0_37] : memref<192x64xf32, #tpu.memory_space<vmem>>, vector<192x64xf32>
    %cst_38 = arith.constant dense<0.000000e+00> : vector<32x64xf32>
    %24 = tpu.matmul %22, %23, %cst_38 {dimension_numbers = #tpu.dot_dimension_numbers<[1], [0], [0], [1], [0, 0, 1, 1], [], []>} : vector<32x192xf32>, vector<192x64xf32>, vector<32x64xf32> -> vector<32x64xf32>
    %c0_39 = arith.constant 0 : index
    %c0_40 = arith.constant 0 : index
    %25 = vector.load %arg5[%c0_39, %c0_40] : memref<1x64xf32, #tpu.memory_space<vmem>>, vector<1x64xf32>
    %26 = vector.broadcast %25 : vector<1x64xf32> to vector<32x64xf32>
    %27 = arith.addf %24, %26 : vector<32x64xf32>
    %c0_41 = arith.constant 0 : index
    %c0_42 = arith.constant 0 : index
    %28 = vector.load %arg17[%c0_41, %c0_42] : memref<32x64xf32, #tpu.memory_space<vmem>>, vector<32x64xf32>
    tpu.vector_store %arg17[%c0_41, %c0_42], %27 {strides = array<i32>} : memref<32x64xf32, #tpu.memory_space<vmem>>, vector<32x64xf32>,
    %c0_43 = arith.constant 0 : index
    %c0_44 = arith.constant 0 : index
    %29 = tpu.strided_load %arg17[%c0_43, %c0_44] {strides = array<i32: 2, 1>} : memref<32x64xf32, #tpu.memory_space<vmem>>, vector<16x64xf32>
    %c1_45 = arith.constant 1 : index
    %c0_46 = arith.constant 0 : index
    %30 = tpu.strided_load %arg17[%c1_45, %c0_46] {strides = array<i32: 2, 1>} : memref<32x64xf32, #tpu.memory_space<vmem>>, vector<16x64xf32>
    %31 = arith.maximumf %29, %30 : vector<16x64xf32>
    %32 = vector.extract_strided_slice %31 {offsets = [0, 0], sizes = [16, 60], strides = [1, 1]} : vector<16x64xf32> to vector<16x60xf32>
    %33 = vector.extract_strided_slice %31 {offsets = [0, 4], sizes = [16, 60], strides = [1, 1]} : vector<16x64xf32> to vector<16x60xf32>
    %34 = arith.maximumf %32, %33 : vector<16x60xf32>
    %35 = vector.shape_cast %34 : vector<16x60xf32> to vector<2x8x60xf32>
    %cst_47 = arith.constant 0.000000e+00 : f32
    %36 = vector.broadcast %cst_47 : f32 to vector<2x2x60xf32>
    %c0_48 = arith.constant 0 : index
    %c0_49 = arith.constant 0 : index
    %c0_50 = arith.constant 0 : index
    %37 = vector.load %arg15[%c0_48, %c0_49, %c0_50] : memref<2x10x60xf32, #tpu.memory_space<vmem>>, vector<2x2x60xf32>
    tpu.vector_store %arg15[%c0_48, %c0_49, %c0_50], %36 {strides = array<i32>} : memref<2x10x60xf32, #tpu.memory_space<vmem>>, vector<2x2x60xf32>,
    %c0_51 = arith.constant 0 : index
    %c2_52 = arith.constant 2 : index
    %c0_53 = arith.constant 0 : index
    %38 = vector.load %arg15[%c0_51, %c2_52, %c0_53] : memref<2x10x60xf32, #tpu.memory_space<vmem>>, vector<2x8x60xf32>
    tpu.vector_store %arg15[%c0_51, %c2_52, %c0_53], %35 {strides = array<i32>} : memref<2x10x60xf32, #tpu.memory_space<vmem>>, vector<2x8x60xf32>,
    %c0_54 = arith.constant 0 : index
    %c0_55 = arith.constant 0 : index
    %c0_56 = arith.constant 0 : index
    %39 = vector.load %arg15[%c0_54, %c0_55, %c0_56] : memref<2x10x60xf32, #tpu.memory_space<vmem>>, vector<2x8x60xf32>
    %c0_57 = arith.constant 0 : index
    %c1_58 = arith.constant 1 : index
    %c0_59 = arith.constant 0 : index
    %40 = vector.load %arg15[%c0_57, %c1_58, %c0_59] : memref<2x10x60xf32, #tpu.memory_space<vmem>>, vector<2x8x60xf32>
    %c0_60 = arith.constant 0 : index
    %c2_61 = arith.constant 2 : index
    %c0_62 = arith.constant 0 : index
    %41 = vector.load %arg15[%c0_60, %c2_61, %c0_62] : memref<2x10x60xf32, #tpu.memory_space<vmem>>, vector<2x8x60xf32>
    %42 = tpu.concatenate %39, %40, %41 in 2 : vector<2x8x60xf32>, vector<2x8x60xf32>, vector<2x8x60xf32> -> vector<2x8x180xf32>
    %43 = vector.shape_cast %42 : vector<2x8x180xf32> to vector<16x180xf32>
    %c0_63 = arith.constant 0 : index
    %c0_64 = arith.constant 0 : index
    %44 = vector.load %arg6[%c0_63, %c0_64] : memref<180x64xf32, #tpu.memory_space<vmem>>, vector<180x64xf32>
    %cst_65 = arith.constant dense<0.000000e+00> : vector<16x64xf32>
    %45 = tpu.matmul %43, %44, %cst_65 {dimension_numbers = #tpu.dot_dimension_numbers<[1], [0], [0], [1], [0, 0, 1, 1], [], []>} : vector<16x180xf32>, vector<180x64xf32>, vector<16x64xf32> -> vector<16x64xf32>
    %c0_66 = arith.constant 0 : index
    %c0_67 = arith.constant 0 : index
    %46 = vector.load %arg7[%c0_66, %c0_67] : memref<1x64xf32, #tpu.memory_space<vmem>>, vector<1x64xf32>
    %47 = vector.broadcast %46 : vector<1x64xf32> to vector<16x64xf32>
    %48 = arith.addf %45, %47 : vector<16x64xf32>
    %49 = vector.shape_cast %48 : vector<16x64xf32> to vector<2x8x64xf32>
    %cst_68 = arith.constant 0.000000e+00 : f32
    %50 = vector.broadcast %cst_68 : f32 to vector<2x2x64xf32>
    %c0_69 = arith.constant 0 : index
    %c0_70 = arith.constant 0 : index
    %c0_71 = arith.constant 0 : index
    %51 = vector.load %arg16[%c0_69, %c0_70, %c0_71] : memref<2x10x64xf32, #tpu.memory_space<vmem>>, vector<2x2x64xf32>
    tpu.vector_store %arg16[%c0_69, %c0_70, %c0_71], %50 {strides = array<i32>} : memref<2x10x64xf32, #tpu.memory_space<vmem>>, vector<2x2x64xf32>,
    %c0_72 = arith.constant 0 : index
    %c2_73 = arith.constant 2 : index
    %c0_74 = arith.constant 0 : index
    %52 = vector.load %arg16[%c0_72, %c2_73, %c0_74] : memref<2x10x64xf32, #tpu.memory_space<vmem>>, vector<2x8x64xf32>
    tpu.vector_store %arg16[%c0_72, %c2_73, %c0_74], %49 {strides = array<i32>} : memref<2x10x64xf32, #tpu.memory_space<vmem>>, vector<2x8x64xf32>,
    %c0_75 = arith.constant 0 : index
    %c0_76 = arith.constant 0 : index
    %c0_77 = arith.constant 0 : index
    %53 = vector.load %arg16[%c0_75, %c0_76, %c0_77] : memref<2x10x64xf32, #tpu.memory_space<vmem>>, vector<2x8x64xf32>
    %c0_78 = arith.constant 0 : index
    %c1_79 = arith.constant 1 : index
    %c0_80 = arith.constant 0 : index
    %54 = vector.load %arg16[%c0_78, %c1_79, %c0_80] : memref<2x10x64xf32, #tpu.memory_space<vmem>>, vector<2x8x64xf32>
    %c0_81 = arith.constant 0 : index
    %c2_82 = arith.constant 2 : index
    %c0_83 = arith.constant 0 : index
    %55 = vector.load %arg16[%c0_81, %c2_82, %c0_83] : memref<2x10x64xf32, #tpu.memory_space<vmem>>, vector<2x8x64xf32>
    %56 = tpu.concatenate %53, %54, %55 in 2 : vector<2x8x64xf32>, vector<2x8x64xf32>, vector<2x8x64xf32> -> vector<2x8x192xf32>
    %57 = vector.shape_cast %56 : vector<2x8x192xf32> to vector<16x192xf32>
    %c0_84 = arith.constant 0 : index
    %c0_85 = arith.constant 0 : index
    %58 = vector.load %arg8[%c0_84, %c0_85] : memref<192x64xf32, #tpu.memory_space<vmem>>, vector<192x64xf32>
    %cst_86 = arith.constant dense<0.000000e+00> : vector<16x64xf32>
    %59 = tpu.matmul %57, %58, %cst_86 {dimension_numbers = #tpu.dot_dimension_numbers<[1], [0], [0], [1], [0, 0, 1, 1], [], []>} : vector<16x192xf32>, vector<192x64xf32>, vector<16x64xf32> -> vector<16x64xf32>
    %c0_87 = arith.constant 0 : index
    %c0_88 = arith.constant 0 : index
    %60 = vector.load %arg9[%c0_87, %c0_88] : memref<1x64xf32, #tpu.memory_space<vmem>>, vector<1x64xf32>
    %61 = vector.broadcast %60 : vector<1x64xf32> to vector<16x64xf32>
    %62 = arith.addf %59, %61 : vector<16x64xf32>
    %c0_89 = arith.constant 0 : index
    %c0_90 = arith.constant 0 : index
    %63 = vector.load %arg18[%c0_89, %c0_90] : memref<16x64xf32, #tpu.memory_space<vmem>>, vector<16x64xf32>
    tpu.vector_store %arg18[%c0_89, %c0_90], %62 {strides = array<i32>} : memref<16x64xf32, #tpu.memory_space<vmem>>, vector<16x64xf32>,
    %c0_91 = arith.constant 0 : index
    %c0_92 = arith.constant 0 : index
    %64 = tpu.strided_load %arg18[%c0_91, %c0_92] {strides = array<i32: 2, 1>} : memref<16x64xf32, #tpu.memory_space<vmem>>, vector<8x64xf32>
    %c1_93 = arith.constant 1 : index
    %c0_94 = arith.constant 0 : index
    %65 = tpu.strided_load %arg18[%c1_93, %c0_94] {strides = array<i32: 2, 1>} : memref<16x64xf32, #tpu.memory_space<vmem>>, vector<8x64xf32>
    %66 = arith.maximumf %64, %65 : vector<8x64xf32>
    %67 = vector.extract_strided_slice %66 {offsets = [0, 0], sizes = [8, 56], strides = [1, 1]} : vector<8x64xf32> to vector<8x56xf32>
    %68 = vector.extract_strided_slice %66 {offsets = [0, 8], sizes = [8, 56], strides = [1, 1]} : vector<8x64xf32> to vector<8x56xf32>
    %69 = arith.maximumf %67, %68 : vector<8x56xf32>
    %c0_95 = arith.constant 0 : index
    %c0_96 = arith.constant 0 : index
    %70 = vector.load %arg10[%c0_95, %c0_96] : memref<56x32xf32, #tpu.memory_space<vmem>>, vector<56x32xf32>
    %cst_97 = arith.constant dense<0.000000e+00> : vector<8x32xf32>
    %71 = tpu.matmul %69, %70, %cst_97 {dimension_numbers = #tpu.dot_dimension_numbers<[1], [0], [0], [1], [0, 0, 1, 1], [], []>} : vector<8x56xf32>, vector<56x32xf32>, vector<8x32xf32> -> vector<8x32xf32>
    %c0_98 = arith.constant 0 : index
    %c0_99 = arith.constant 0 : index
    %72 = vector.load %arg11[%c0_98, %c0_99] : memref<1x32xf32, #tpu.memory_space<vmem>>, vector<1x32xf32>
    %73 = vector.broadcast %72 : vector<1x32xf32> to vector<8x32xf32>
    %74 = arith.addf %71, %73 : vector<8x32xf32>
    %75 = vector.extract_strided_slice %74 {offsets = [0, 0], sizes = [4, 32], strides = [1, 1]} : vector<8x32xf32> to vector<4x32xf32>
    %c0_100 = arith.constant 0 : index
    %c0_101 = arith.constant 0 : index
    %c0_102 = arith.constant 0 : index
    %76 = vector.load %arg12[%c0_100, %c0_101, %c0_102] : memref<2x4x32xf32, #tpu.memory_space<vmem>>, vector<1x4x32xf32>
    %77 = vector.shape_cast %76 : vector<1x4x32xf32> to vector<4x32xf32>
    %78 = vector.shape_cast %75 : vector<4x32xf32> to vector<1x4x32xf32>
    tpu.vector_store %arg12[%c0_100, %c0_101, %c0_102], %78 {strides = array<i32>} : memref<2x4x32xf32, #tpu.memory_space<vmem>>, vector<1x4x32xf32>,
    %79 = vector.extract_strided_slice %74 {offsets = [4, 0], sizes = [4, 32], strides = [1, 1]} : vector<8x32xf32> to vector<4x32xf32>
    %c1_103 = arith.constant 1 : index
    %c0_104 = arith.constant 0 : index
    %c0_105 = arith.constant 0 : index
    %80 = vector.load %arg12[%c1_103, %c0_104, %c0_105] : memref<2x4x32xf32, #tpu.memory_space<vmem>>, vector<1x4x32xf32>
    %81 = vector.shape_cast %80 : vector<1x4x32xf32> to vector<4x32xf32>
    %82 = vector.shape_cast %79 : vector<4x32xf32> to vector<1x4x32xf32>
    tpu.vector_store %arg12[%c1_103, %c0_104, %c0_105], %82 {strides = array<i32>} : memref<2x4x32xf32, #tpu.memory_space<vmem>>, vector<1x4x32xf32>,
    return
  }
  func.func @transform_0(%arg0: i32) -> (i32, i32, i32) {
    %c0_i32 = arith.constant 0 : i32
    %c0_i32_0 = arith.constant 0 : i32
    %c0_i32_1 = arith.constant 0 : i32
    return %arg0, %c0_i32, %c0_i32_0 : i32, i32, i32
  }
  func.func @transform_1(%arg0: i32) -> (i32, i32) {
    %c0_i32 = arith.constant 0 : i32
    %c0_i32_0 = arith.constant 0 : i32
    %c0_i32_1 = arith.constant 0 : i32
    return %c0_i32, %c0_i32_0 : i32, i32
  }
  func.func @transform_2(%arg0: i32) -> (i32, i32) {
    %c0_i32 = arith.constant 0 : i32
    %c0_i32_0 = arith.constant 0 : i32
    %c0_i32_1 = arith.constant 0 : i32
    return %c0_i32, %c0_i32_0 : i32, i32
  }
  func.func @transform_3(%arg0: i32) -> (i32, i32) {
    %c0_i32 = arith.constant 0 : i32
    %c0_i32_0 = arith.constant 0 : i32
    %c0_i32_1 = arith.constant 0 : i32
    return %c0_i32, %c0_i32_0 : i32, i32
  }
  func.func @transform_4(%arg0: i32) -> (i32, i32) {
    %c0_i32 = arith.constant 0 : i32
    %c0_i32_0 = arith.constant 0 : i32
    %c0_i32_1 = arith.constant 0 : i32
    return %c0_i32, %c0_i32_0 : i32, i32
  }
  func.func @transform_5(%arg0: i32) -> (i32, i32) {
    %c0_i32 = arith.constant 0 : i32
    %c0_i32_0 = arith.constant 0 : i32
    %c0_i32_1 = arith.constant 0 : i32
    return %c0_i32, %c0_i32_0 : i32, i32
  }
  func.func @transform_6(%arg0: i32) -> (i32, i32) {
    %c0_i32 = arith.constant 0 : i32
    %c0_i32_0 = arith.constant 0 : i32
    %c0_i32_1 = arith.constant 0 : i32
    return %c0_i32, %c0_i32_0 : i32, i32
  }
  func.func @transform_7(%arg0: i32) -> (i32, i32) {
    %c0_i32 = arith.constant 0 : i32
    %c0_i32_0 = arith.constant 0 : i32
    %c0_i32_1 = arith.constant 0 : i32
    return %c0_i32, %c0_i32_0 : i32, i32
  }
  func.func @transform_8(%arg0: i32) -> (i32, i32) {
    %c0_i32 = arith.constant 0 : i32
    %c0_i32_0 = arith.constant 0 : i32
    %c0_i32_1 = arith.constant 0 : i32
    return %c0_i32, %c0_i32_0 : i32, i32
  }
  func.func @transform_9(%arg0: i32) -> (i32, i32) {
    %c0_i32 = arith.constant 0 : i32
    %c0_i32_0 = arith.constant 0 : i32
    %c0_i32_1 = arith.constant 0 : i32
    return %c0_i32, %c0_i32_0 : i32, i32
  }
  func.func @transform_10(%arg0: i32) -> (i32, i32) {
    %c0_i32 = arith.constant 0 : i32
    %c0_i32_0 = arith.constant 0 : i32
    %c0_i32_1 = arith.constant 0 : i32
    return %c0_i32, %c0_i32_0 : i32, i32
  }
  func.func @transform_11(%arg0: i32) -> (i32, i32, i32) {
    %c0_i32 = arith.constant 0 : i32
    %c0_i32_0 = arith.constant 0 : i32
    %c0_i32_1 = arith.constant 0 : i32
    return %arg0, %c0_i32, %c0_i32_0 : i32, i32, i32
  }
}

</mosaic_0001>

<llo_original>
// kernel: tile.23
$region0: #{tile.23}
  #allocation0 [shape = 's32[1]{0}', space=sflag, size = 0x4, scoped, tag = 'scoped memory for tile.23']
  %s0 = inlined_call_operand.vmem [shape: f32[4], index: 0, kind: input, shape index: {}]
  %s1 = inlined_call_operand.vmem [shape: f32[16,4], index: 1, kind: output, shape index: {}]
  // Predicated region
  $region2: #{tile.23} parent=0 // pred_check
    _
  $region3: #{tile.23} parent=0 // pred_check_branch
    %3 = sbr.rel (0) target = $region5
  $region4: #{tile.23} parent=0 // pred_region
    _
  $region5: #{tile.23} parent=0 // pred_fallthru
    _
  %v4 = vld [vmem:[%s0] ss:$0 sm:$0xff]
  %5 = vst [vmem:[%s1] sm:$0xff] %v4
  %s6 = scalar_lea.vmem %s1, 8
  %7 = vst [vmem:[%s6] sm:$0xff] %v4

// kernel: tile.24
$region0: #{tile.24}
  %s0 = inlined_call_operand.vmem [shape: f32[16,4], index: 0, kind: input, shape index: {}]
  %s1 = inlined_call_operand.vmem [shape: f32[1,64], index: 1, kind: output, shape index: {}]
  $region1: #{tile.24} parent=0
    #allocation0 [shape = 'u8[4096]{0}', space=vmem, size = 0x1000, scoped, tag = 'scoped mem for output reshape']
    %v2 = vld [vmem:[%s0] sm:$0x1]
    %vm3 = vcmask 31744
    %4 = vst.msk [vmem:[#allocation0] sm:$0x1] %vm3, %v2
    %s5 = scalar_lea.vmem %s0, 15
    %v6 = vld [vmem:[%s5] sm:$0x1]
    %7 = vrot.lane.b32.xlu0 %v6, 60
    %v8 = vpop.permute.xlu0 %7
    %vm9 = vcmask 523744
    %10 = vst.msk [vmem:[#allocation0] sm:$0x1] %vm9, %v8
    %s11 = scalar_lea.vmem %s0, 14
    %v12 = vld [vmem:[%s11] sm:$0x1]
    %13 = vrot.lane.b32.xlu0 %v12, 56
    %v14 = vpop.permute.xlu0 %13
    %vm15 = vcmask 490944
    %16 = vst.msk [vmem:[#allocation0] sm:$0x1] %vm15, %v14
    %s17 = scalar_lea.vmem %s0, 13
    %v18 = vld [vmem:[%s17] sm:$0x1]
    %19 = vrot.lane.b32.xlu0 %v18, 52
    %v20 = vpop.permute.xlu0 %19
    %vm21 = vcmask 458144
    %22 = vst.msk [vmem:[#allocation0] sm:$0x1] %vm21, %v20
    %s23 = scalar_lea.vmem %s0, 12
    %v24 = vld [vmem:[%s23] sm:$0x1]
    %25 = vrot.lane.b32.xlu0 %v24, 48
    %v26 = vpop.permute.xlu0 %25
    %vm27 = vcmask 425344
    %28 = vst.msk [vmem:[#allocation0] sm:$0x1] %vm27, %v26
    %s29 = scalar_lea.vmem %s0, 11
    %v30 = vld [vmem:[%s29] sm:$0x1]
    %31 = vrot.lane.b32.xlu0 %v30, 44
    %v32 = vpop.permute.xlu0 %31
    %vm33 = vcmask 392544
    %34 = vst.msk [vmem:[#allocation0] sm:$0x1] %vm33, %v32
    %s35 = scalar_lea.vmem %s0, 10
    %v36 = vld [vmem:[%s35] sm:$0x1]
    %37 = vrot.lane.b32.xlu0 %v36, 40
    %v38 = vpop.permute.xlu0 %37
    %vm39 = vcmask 359744
    %40 = vst.msk [vmem:[#allocation0] sm:$0x1] %vm39, %v38
    %s41 = scalar_lea.vmem %s0, 9
    %v42 = vld [vmem:[%s41] sm:$0x1]
    %43 = vrot.lane.b32.xlu0 %v42, 36
    %v44 = vpop.permute.xlu0 %43
    %vm45 = vcmask 326944
    %46 = vst.msk [vmem:[#allocation0] sm:$0x1] %vm45, %v44
    %s47 = scalar_lea.vmem %s0, 8
    %v48 = vld [vmem:[%s47] sm:$0x1]
    %49 = vrot.lane.b32.xlu0 %v48, 32
    %v50 = vpop.permute.xlu0 %49
    %vm51 = vcmask 294144
    %52 = vst.msk [vmem:[#allocation0] sm:$0x1] %vm51, %v50
    %s53 = scalar_lea.vmem %s0, 7
    %v54 = vld [vmem:[%s53] sm:$0x1]
    %55 = vrot.lane.b32.xlu0 %v54, 28
    %v56 = vpop.permute.xlu0 %55
    %vm57 = vcmask 261344
    %58 = vst.msk [vmem:[#allocation0] sm:$0x1] %vm57, %v56
    %s59 = scalar_lea.vmem %s0, 6
    %v60 = vld [vmem:[%s59] sm:$0x1]
    %61 = vrot.lane.b32.xlu0 %v60, 24
    %v62 = vpop.permute.xlu0 %61
    %vm63 = vcmask 228544
    %64 = vst.msk [vmem:[#allocation0] sm:$0x1] %vm63, %v62
    %s65 = scalar_lea.vmem %s0, 5
    %v66 = vld [vmem:[%s65] sm:$0x1]
    %67 = vrot.lane.b32.xlu0 %v66, 20
    %v68 = vpop.permute.xlu0 %67
    %vm69 = vcmask 195744
    %70 = vst.msk [vmem:[#allocation0] sm:$0x1] %vm69, %v68
    %s71 = scalar_lea.vmem %s0, 4
    %v72 = vld [vmem:[%s71] sm:$0x1]
    %73 = vrot.lane.b32.xlu0 %v72, 16
    %v74 = vpop.permute.xlu0 %73
    %vm75 = vcmask 162944
    %76 = vst.msk [vmem:[#allocation0] sm:$0x1] %vm75, %v74
    %s77 = scalar_lea.vmem %s0, 3
    %v78 = vld [vmem:[%s77] sm:$0x1]
    %79 = vrot.lane.b32.xlu0 %v78, 12
    %v80 = vpop.permute.xlu0 %79
    %vm81 = vcmask 130144
    %82 = vst.msk [vmem:[#allocation0] sm:$0x1] %vm81, %v80
    %s83 = scalar_lea.vmem %s0, 2
    %v84 = vld [vmem:[%s83] sm:$0x1]
    %85 = vrot.lane.b32.xlu0 %v84, 8
    %v86 = vpop.permute.xlu0 %85
    %vm87 = vcmask 97344
    %88 = vst.msk [vmem:[#allocation0] sm:$0x1] %vm87, %v86
    %s89 = scalar_lea.vmem %s0, 1
    %v90 = vld [vmem:[%s89] sm:$0x1]
    %91 = vrot.lane.b32.xlu0 %v90, 4
    %v92 = vpop.permute.xlu0 %91
    %vm93 = vcmask 64544
    %94 = vst.msk [vmem:[#allocation0] sm:$0x1] %vm93, %v92
    %s96 = ssub.s32 2, 1
    %v97 = vld [vmem:[#allocation0] sm:%s96]
    %s99 = ssub.s32 2, 1
    %100 = vst [vmem:[%s1] sm:%s99] %v97

// kernel: tile.33
$region0: #{tile.33}
  #allocation0 [shape = 's32[1]{0}', space=sflag, size = 0x4, scoped, tag = 'scoped memory for tile.33']
  %s0 = inlined_call_operand.vmem [shape: f32[8], index: 0, kind: input, shape index: {}]
  %s1 = inlined_call_operand.vmem [shape: f32[8,8], index: 1, kind: output, shape index: {}]
  // Predicated region
  $region2: #{tile.33} parent=0 // pred_check
    _
  $region3: #{tile.33} parent=0 // pred_check_branch
    %3 = sbr.rel (0) target = $region5
  $region4: #{tile.33} parent=0 // pred_region
    _
  $region5: #{tile.33} parent=0 // pred_fallthru
    _
  %v4 = vld [vmem:[%s0] ss:$0 sm:$0xff]
  %5 = vst [vmem:[%s1] sm:$0xff] %v4

// kernel: tile.34
$region0: #{tile.34}
  %s0 = inlined_call_operand.vmem [shape: f32[8,8], index: 0, kind: input, shape index: {}]
  %s1 = inlined_call_operand.vmem [shape: f32[1,64], index: 1, kind: output, shape index: {}]
  $region1: #{tile.34} parent=0
    #allocation0 [shape = 'u8[4096]{0}', space=vmem, size = 0x1000, scoped, tag = 'scoped mem for output reshape']
    %v2 = vld [vmem:[%s0] sm:$0x1]
    %vm3 = vcmask 64512
    %4 = vst.msk [vmem:[#allocation0] sm:$0x1] %vm3, %v2
    %s5 = scalar_lea.vmem %s0, 7
    %v6 = vld [vmem:[%s5] sm:$0x1]
    %7 = vrot.lane.b32.xlu0 %v6, 56
    %v8 = vpop.permute.xlu0 %7
    %vm9 = vcmask 523712
    %10 = vst.msk [vmem:[#allocation0] sm:$0x1] %vm9, %v8
    %s11 = scalar_lea.vmem %s0, 6
    %v12 = vld [vmem:[%s11] sm:$0x1]
    %13 = vrot.lane.b32.xlu0 %v12, 48
    %v14 = vpop.permute.xlu0 %13
    %vm15 = vcmask 458112
    %16 = vst.msk [vmem:[#allocation0] sm:$0x1] %vm15, %v14
    %s17 = scalar_lea.vmem %s0, 5
    %v18 = vld [vmem:[%s17] sm:$0x1]
    %19 = vrot.lane.b32.xlu0 %v18, 40
    %v20 = vpop.permute.xlu0 %19
    %vm21 = vcmask 392512
    %22 = vst.msk [vmem:[#allocation0] sm:$0x1] %vm21, %v20
    %s23 = scalar_lea.vmem %s0, 4
    %v24 = vld [vmem:[%s23] sm:$0x1]
    %25 = vrot.lane.b32.xlu0 %v24, 32
    %v26 = vpop.permute.xlu0 %25
    %vm27 = vcmask 326912
    %28 = vst.msk [vmem:[#allocation0] sm:$0x1] %vm27, %v26
    %s29 = scalar_lea.vmem %s0, 3
    %v30 = vld [vmem:[%s29] sm:$0x1]
    %31 = vrot.lane.b32.xlu0 %v30, 24
    %v32 = vpop.permute.xlu0 %31
    %vm33 = vcmask 261312
    %34 = vst.msk [vmem:[#allocation0] sm:$0x1] %vm33, %v32
    %s35 = scalar_lea.vmem %s0, 2
    %v36 = vld [vmem:[%s35] sm:$0x1]
    %37 = vrot.lane.b32.xlu0 %v36, 16
    %v38 = vpop.permute.xlu0 %37
    %vm39 = vcmask 195712
    %40 = vst.msk [vmem:[#allocation0] sm:$0x1] %vm39, %v38
    %s41 = scalar_lea.vmem %s0, 1
    %v42 = vld [vmem:[%s41] sm:$0x1]
    %43 = vrot.lane.b32.xlu0 %v42, 8
    %v44 = vpop.permute.xlu0 %43
    %vm45 = vcmask 130112
    %46 = vst.msk [vmem:[#allocation0] sm:$0x1] %vm45, %v44
    %s48 = ssub.s32 2, 1
    %v49 = vld [vmem:[#allocation0] sm:%s48]
    %s51 = ssub.s32 2, 1
    %52 = vst [vmem:[%s1] sm:%s51] %v49

// kernel: _lambda_.1
$region0: #{_lambda_.1}
  #allocation0 [shape = 'u32[]', space=smem, size = 0x4, offset = 0x4, fixed_abs, tag = 'smem constant byte address 0x4 - core index']
  #allocation1 [shape = 'u32[72,128]{1,0:T(1,128)}', space=vmem, size = 0x9000, scoped, tag = 'internal scratch']
  #allocation2 [shape = 'f32[2,18,16]{2,1,0:T(8,128)}', space=vmem, size = 0x6000, scoped, tag = 'scratch operand']
  #allocation3 [shape = 'f32[2,18,64]{2,1,0:T(8,128)}', space=vmem, size = 0x6000, scoped, tag = 'scratch operand']
  #allocation4 [shape = 'f32[2,10,60]{2,1,0:T(8,128)}', space=vmem, size = 0x4000, scoped, tag = 'scratch operand']
  #allocation5 [shape = 'f32[2,10,64]{2,1,0:T(8,128)}', space=vmem, size = 0x4000, scoped, tag = 'scratch operand']
  #allocation6 [shape = 'f32[32,64]{1,0:T(8,128)}', space=vmem, size = 0x4000, scoped, tag = 'scratch operand']
  #allocation7 [shape = 'f32[16,64]{1,0:T(8,128)}', space=vmem, size = 0x2000, scoped, tag = 'scratch operand']
  %s0 = inlined_call_operand.vmem [shape: f32[4,16,16], index: 0, kind: input, shape index: {}]
  %s1 = inlined_call_operand.vmem [shape: f32[48,64], index: 1, kind: input, shape index: {}]
  %s2 = inlined_call_operand.vmem [shape: f32[1,64], index: 2, kind: input, shape index: {}]
  %s3 = inlined_call_operand.vmem [shape: f32[192,64], index: 3, kind: input, shape index: {}]
  %s4 = inlined_call_operand.vmem [shape: f32[1,64], index: 4, kind: input, shape index: {}]
  %s5 = inlined_call_operand.vmem [shape: f32[180,64], index: 5, kind: input, shape index: {}]
  %s6 = inlined_call_operand.vmem [shape: f32[1,64], index: 6, kind: input, shape index: {}]
  %s7 = inlined_call_operand.vmem [shape: f32[192,64], index: 7, kind: input, shape index: {}]
  %s8 = inlined_call_operand.vmem [shape: f32[1,64], index: 8, kind: input, shape index: {}]
  %s9 = inlined_call_operand.vmem [shape: f32[56,32], index: 9, kind: input, shape index: {}]
  %s10 = inlined_call_operand.vmem [shape: f32[1,32], index: 10, kind: input, shape index: {}]
  %s11 = inlined_call_operand.hbm [shape: f32[4,4,32], index: 11, kind: output, shape index: {}]
  %s12 = sld [smem:[#allocation0]]
  $region77: #{_lambda_.1} parent=0
    _
  %s14 = ssub.s32 1, %s12
  %s15 = scalar_select 0, %s14, %s12
  $region1: #{_lambda_.1} parent=0
    #allocation8 [shape = 'u8[8192]{0}', space=vmem, size = 0x2000, scoped, tag = 'output window, operand 0']
    #allocation9 [shape = 's32[2]{0}', space=sflag, size = 0x8, scoped, tag = 'scoped memory for _lambda_.1']
    %16 = vsyncpa [#allocation9], 0
    %s17 = scalar_lea.sflag [#allocation9], 1
    %18 = vsyncpa %s17, 0
    loop: start=0, step=1, limit=4
    $region2: #{_lambda_.1} parent=1 // loop_pre_header
      _
    $region3: #{_lambda_.1} parent=1 // loop_header
      %s20 = sphi 0, %s24
      %p21 = scmp.ge.s32.totalorder %s20, 4
      %s30 = sphi 0, %s32
      %s33 = sphi 0, %s30
      %s34 = sphi 0, %s33
      %s50 = sphi 0, %s34
      %s54 = sphi 0, %s54
      %s56 = sphi 0, %s54
      %s57 = sphi 0, %s56
      %s71 = sphi 0, %s57
      %s75 = sphi 0, %s75
      %s77 = sphi 0, %s75
      %s78 = sphi 0, %s77
      %s92 = sphi 0, %s78
      %s96 = sphi 0, %s96
      %s98 = sphi 0, %s96
      %s99 = sphi 0, %s98
      %s113 = sphi 0, %s99
      %s117 = sphi 0, %s117
      %s119 = sphi 0, %s117
      %s120 = sphi 0, %s119
      %s134 = sphi 0, %s120
      %s138 = sphi 0, %s138
      %s140 = sphi 0, %s138
      %s141 = sphi 0, %s140
      %s155 = sphi 0, %s141
      %s159 = sphi 0, %s159
      %s161 = sphi 0, %s159
      %s162 = sphi 0, %s161
      %s176 = sphi 0, %s162
      %s180 = sphi 0, %s180
      %s182 = sphi 0, %s180
      %s183 = sphi 0, %s182
      %s197 = sphi 0, %s183
      %s201 = sphi 0, %s201
      %s203 = sphi 0, %s201
      %s204 = sphi 0, %s203
      %s218 = sphi 0, %s204
      %s222 = sphi 0, %s222
      %s224 = sphi 0, %s222
      %s225 = sphi 0, %s224
      %s239 = sphi 0, %s225
      %s243 = sphi 0, %s243
      %s245 = sphi 0, %s243
      %s246 = sphi 0, %s245
      %s260 = sphi 0, %s246
      %s266 = sphi 0, %s268
      %s269 = sphi 0, %s266
      %s270 = sphi 0, %s269
      %s286 = sphi 0, %s270
    $region4: #{_lambda_.1} parent=1 // loop_header_branch
      %23 = sbr.rel (%p21) target = $region8
    $region5: #{_lambda_.1} parent=1 // loop_body
      %s25 = ssub.s32 %s20, 1
      %s26 = ssub.s32 %s20, 2
      %s27 = sadd.s32 %s20, 1
      %s28 = ssub.s32 %s20, %s27
      %p29 = scmp.eq.s32.totalorder %s28, 0
      %s31 = sadd.s32 %s30, 1
      %s32 = scalar_select %p29, %s30, %s31
      %p35 = pneg %p29
      %p36 = scmp.eq.s32.totalorder %s20, 1
      %p37 = por %p35, %p36
      %p38 = scmp.ne.s32.totalorder %s30, %s33
      %p39 = scmp.eq.s32.totalorder %s20, 0
      %p40 = por %p38, %p39
      %p41 = scmp.ne.s32.totalorder %s30, %s33
      %p42 = scmp.eq.s32.totalorder %s25, 1
      %p43 = por %p41, %p42
      %p44 = scmp.ne.s32.totalorder %s33, %s34
      %p45 = scmp.eq.s32.totalorder %s25, 0
      %p46 = por %p44, %p45
      %p47 = scmp.ne.s32.totalorder %s33, %s34
      %p48 = scmp.eq.s32.totalorder %s26, 1
      %p49 = por %p47, %p48
      %p51 = scmp.ne.s32.totalorder %s34, %s50
      %p52 = scmp.eq.s32.totalorder %s26, 0
      %p53 = por %p51, %p52
      %s55 = sadd.s32 %s54, 1
      %p58 = scmp.eq.s32.totalorder %s20, 1
      %p59 = scmp.ne.s32.totalorder %s54, %s56
      %p60 = scmp.eq.s32.totalorder %s20, 0
      %p61 = por %p59, %p60
      %p62 = scmp.ne.s32.totalorder %s54, %s56
      %p63 = scmp.eq.s32.totalorder %s25, 1
      %p64 = por %p62, %p63
      %p65 = scmp.ne.s32.totalorder %s56, %s57
      %p66 = scmp.eq.s32.totalorder %s25, 0
      %p67 = por %p65, %p66
      %p68 = scmp.ne.s32.totalorder %s56, %s57
      %p69 = scmp.eq.s32.totalorder %s26, 1
      %p70 = por %p68, %p69
      %p72 = scmp.ne.s32.totalorder %s57, %s71
      %p73 = scmp.eq.s32.totalorder %s26, 0
      %p74 = por %p72, %p73
      %s76 = sadd.s32 %s75, 1
      %p79 = scmp.eq.s32.totalorder %s20, 1
      %p80 = scmp.ne.s32.totalorder %s75, %s77
      %p81 = scmp.eq.s32.totalorder %s20, 0
      %p82 = por %p80, %p81
      %p83 = scmp.ne.s32.totalorder %s75, %s77
      %p84 = scmp.eq.s32.totalorder %s25, 1
      %p85 = por %p83, %p84
      %p86 = scmp.ne.s32.totalorder %s77, %s78
      %p87 = scmp.eq.s32.totalorder %s25, 0
      %p88 = por %p86, %p87
      %p89 = scmp.ne.s32.totalorder %s77, %s78
      %p90 = scmp.eq.s32.totalorder %s26, 1
      %p91 = por %p89, %p90
      %p93 = scmp.ne.s32.totalorder %s78, %s92
      %p94 = scmp.eq.s32.totalorder %s26, 0
      %p95 = por %p93, %p94
      %s97 = sadd.s32 %s96, 1
      %p100 = scmp.eq.s32.totalorder %s20, 1
      %p101 = scmp.ne.s32.totalorder %s96, %s98
      %p102 = scmp.eq.s32.totalorder %s20, 0
      %p103 = por %p101, %p102
      %p104 = scmp.ne.s32.totalorder %s96, %s98
      %p105 = scmp.eq.s32.totalorder %s25, 1
      %p106 = por %p104, %p105
      %p107 = scmp.ne.s32.totalorder %s98, %s99
      %p108 = scmp.eq.s32.totalorder %s25, 0
      %p109 = por %p107, %p108
      %p110 = scmp.ne.s32.totalorder %s98, %s99
      %p111 = scmp.eq.s32.totalorder %s26, 1
      %p112 = por %p110, %p111
      %p114 = scmp.ne.s32.totalorder %s99, %s113
      %p115 = scmp.eq.s32.totalorder %s26, 0
      %p116 = por %p114, %p115
      %s118 = sadd.s32 %s117, 1
      %p121 = scmp.eq.s32.totalorder %s20, 1
      %p122 = scmp.ne.s32.totalorder %s117, %s119
      %p123 = scmp.eq.s32.totalorder %s20, 0
      %p124 = por %p122, %p123
      %p125 = scmp.ne.s32.totalorder %s117, %s119
      %p126 = scmp.eq.s32.totalorder %s25, 1
      %p127 = por %p125, %p126
      %p128 = scmp.ne.s32.totalorder %s119, %s120
      %p129 = scmp.eq.s32.totalorder %s25, 0
      %p130 = por %p128, %p129
      %p131 = scmp.ne.s32.totalorder %s119, %s120
      %p132 = scmp.eq.s32.totalorder %s26, 1
      %p133 = por %p131, %p132
      %p135 = scmp.ne.s32.totalorder %s120, %s134
      %p136 = scmp.eq.s32.totalorder %s26, 0
      %p137 = por %p135, %p136
      %s139 = sadd.s32 %s138, 1
      %p142 = scmp.eq.s32.totalorder %s20, 1
      %p143 = scmp.ne.s32.totalorder %s138, %s140
      %p144 = scmp.eq.s32.totalorder %s20, 0
      %p145 = por %p143, %p144
      %p146 = scmp.ne.s32.totalorder %s138, %s140
      %p147 = scmp.eq.s32.totalorder %s25, 1
      %p148 = por %p146, %p147
      %p149 = scmp.ne.s32.totalorder %s140, %s141
      %p150 = scmp.eq.s32.totalorder %s25, 0
      %p151 = por %p149, %p150
      %p152 = scmp.ne.s32.totalorder %s140, %s141
      %p153 = scmp.eq.s32.totalorder %s26, 1
      %p154 = por %p152, %p153
      %p156 = scmp.ne.s32.totalorder %s141, %s155
      %p157 = scmp.eq.s32.totalorder %s26, 0
      %p158 = por %p156, %p157
      %s160 = sadd.s32 %s159, 1
      %p163 = scmp.eq.s32.totalorder %s20, 1
      %p164 = scmp.ne.s32.totalorder %s159, %s161
      %p165 = scmp.eq.s32.totalorder %s20, 0
      %p166 = por %p164, %p165
      %p167 = scmp.ne.s32.totalorder %s159, %s161
      %p168 = scmp.eq.s32.totalorder %s25, 1
      %p169 = por %p167, %p168
      %p170 = scmp.ne.s32.totalorder %s161, %s162
      %p171 = scmp.eq.s32.totalorder %s25, 0
      %p172 = por %p170, %p171
      %p173 = scmp.ne.s32.totalorder %s161, %s162
      %p174 = scmp.eq.s32.totalorder %s26, 1
      %p175 = por %p173, %p174
      %p177 = scmp.ne.s32.totalorder %s162, %s176
      %p178 = scmp.eq.s32.totalorder %s26, 0
      %p179 = por %p177, %p178
      %s181 = sadd.s32 %s180, 1
      %p184 = scmp.eq.s32.totalorder %s20, 1
      %p185 = scmp.ne.s32.totalorder %s180, %s182
      %p186 = scmp.eq.s32.totalorder %s20, 0
      %p187 = por %p185, %p186
      %p188 = scmp.ne.s32.totalorder %s180, %s182
      %p189 = scmp.eq.s32.totalorder %s25, 1
      %p190 = por %p188, %p189
      %p191 = scmp.ne.s32.totalorder %s182, %s183
      %p192 = scmp.eq.s32.totalorder %s25, 0
      %p193 = por %p191, %p192
      %p194 = scmp.ne.s32.totalorder %s182, %s183
      %p195 = scmp.eq.s32.totalorder %s26, 1
      %p196 = por %p194, %p195
      %p198 = scmp.ne.s32.totalorder %s183, %s197
      %p199 = scmp.eq.s32.totalorder %s26, 0
      %p200 = por %p198, %p199
      %s202 = sadd.s32 %s201, 1
      %p205 = scmp.eq.s32.totalorder %s20, 1
      %p206 = scmp.ne.s32.totalorder %s201, %s203
      %p207 = scmp.eq.s32.totalorder %s20, 0
      %p208 = por %p206, %p207
      %p209 = scmp.ne.s32.totalorder %s201, %s203
      %p210 = scmp.eq.s32.totalorder %s25, 1
      %p211 = por %p209, %p210
      %p212 = scmp.ne.s32.totalorder %s203, %s204
      %p213 = scmp.eq.s32.totalorder %s25, 0
      %p214 = por %p212, %p213
      %p215 = scmp.ne.s32.totalorder %s203, %s204
      %p216 = scmp.eq.s32.totalorder %s26, 1
      %p217 = por %p215, %p216
      %p219 = scmp.ne.s32.totalorder %s204, %s218
      %p220 = scmp.eq.s32.totalorder %s26, 0
      %p221 = por %p219, %p220
      %s223 = sadd.s32 %s222, 1
      %p226 = scmp.eq.s32.totalorder %s20, 1
      %p227 = scmp.ne.s32.totalorder %s222, %s224
      %p228 = scmp.eq.s32.totalorder %s20, 0
      %p229 = por %p227, %p228
      %p230 = scmp.ne.s32.totalorder %s222, %s224
      %p231 = scmp.eq.s32.totalorder %s25, 1
      %p232 = por %p230, %p231
      %p233 = scmp.ne.s32.totalorder %s224, %s225
      %p234 = scmp.eq.s32.totalorder %s25, 0
      %p235 = por %p233, %p234
      %p236 = scmp.ne.s32.totalorder %s224, %s225
      %p237 = scmp.eq.s32.totalorder %s26, 1
      %p238 = por %p236, %p237
      %p240 = scmp.ne.s32.totalorder %s225, %s239
      %p241 = scmp.eq.s32.totalorder %s26, 0
      %p242 = por %p240, %p241
      %s244 = sadd.s32 %s243, 1
      %p247 = scmp.eq.s32.totalorder %s20, 1
      %p248 = scmp.ne.s32.totalorder %s243, %s245
      %p249 = scmp.eq.s32.totalorder %s20, 0
      %p250 = por %p248, %p249
      %p251 = scmp.ne.s32.totalorder %s243, %s245
      %p252 = scmp.eq.s32.totalorder %s25, 1
      %p253 = por %p251, %p252
      %p254 = scmp.ne.s32.totalorder %s245, %s246
      %p255 = scmp.eq.s32.totalorder %s25, 0
      %p256 = por %p254, %p255
      %p257 = scmp.ne.s32.totalorder %s245, %s246
      %p258 = scmp.eq.s32.totalorder %s26, 1
      %p259 = por %p257, %p258
      %p261 = scmp.ne.s32.totalorder %s246, %s260
      %p262 = scmp.eq.s32.totalorder %s26, 0
      %p263 = por %p261, %p262
      %s264 = ssub.s32 %s20, %s27
      %p265 = scmp.eq.s32.totalorder %s264, 0
      %s267 = sadd.s32 %s266, 1
      %s268 = scalar_select %p265, %s266, %s267
      %p271 = pneg %p265
      %p272 = scmp.eq.s32.totalorder %s20, 1
      %p273 = por %p271, %p272
      %p274 = scmp.ne.s32.totalorder %s266, %s269
      %p275 = scmp.eq.s32.totalorder %s20, 0
      %p276 = por %p274, %p275
      %p277 = scmp.ne.s32.totalorder %s266, %s269
      %p278 = scmp.eq.s32.totalorder %s25, 1
      %p279 = por %p277, %p278
      %p280 = scmp.ne.s32.totalorder %s269, %s270
      %p281 = scmp.eq.s32.totalorder %s25, 0
      %p282 = por %p280, %p281
      %p283 = scmp.ne.s32.totalorder %s269, %s270
      %p284 = scmp.eq.s32.totalorder %s26, 1
      %p285 = por %p283, %p284
      %p287 = scmp.ne.s32.totalorder %s270, %s286
      %p288 = scmp.eq.s32.totalorder %s26, 0
      %p289 = por %p287, %p288
      %p290 = scmp.le.s32.totalorder 1, %s20
      %p291 = scmp.lt.s32.totalorder %s20, 3
      %p292 = pnand %p290, %p291
      %p293 = pneg %p292
      // Predicated region
      $region9: #{_lambda_.1} parent=5 // pred_check
        _
      $region10: #{_lambda_.1} parent=5 // pred_check_branch
        %295 = sbr.rel (%p292) target = $region12
      $region11: #{_lambda_.1} parent=5 // pred_region
        %s296 = ssub.s32 %s20, 1
        // Predicated region
        $region13: #{_lambda_.1} parent=11 // pred_check
          %p297 = pneg %p67
        $region14: #{_lambda_.1} parent=11 // pred_check_branch
          %299 = sbr.rel (%p297) target = $region16
        $region15: #{_lambda_.1} parent=11 // pred_region
          _
        $region16: #{_lambda_.1} parent=11 // pred_fallthru
          _
        // Predicated region
        $region17: #{_lambda_.1} parent=11 // pred_check
          %p300 = pneg %p88
        $region18: #{_lambda_.1} parent=11 // pred_check_branch
          %302 = sbr.rel (%p300) target = $region20
        $region19: #{_lambda_.1} parent=11 // pred_region
          _
        $region20: #{_lambda_.1} parent=11 // pred_fallthru
          _
        // Predicated region
        $region21: #{_lambda_.1} parent=11 // pred_check
          %p303 = pneg %p109
        $region22: #{_lambda_.1} parent=11 // pred_check_branch
          %305 = sbr.rel (%p303) target = $region24
        $region23: #{_lambda_.1} parent=11 // pred_region
          _
        $region24: #{_lambda_.1} parent=11 // pred_fallthru
          _
        // Predicated region
        $region25: #{_lambda_.1} parent=11 // pred_check
          %p306 = pneg %p130
        $region26: #{_lambda_.1} parent=11 // pred_check_branch
          %308 = sbr.rel (%p306) target = $region28
        $region27: #{_lambda_.1} parent=11 // pred_region
          _
        $region28: #{_lambda_.1} parent=11 // pred_fallthru
          _
        // Predicated region
        $region29: #{_lambda_.1} parent=11 // pred_check
          %p309 = pneg %p151
        $region30: #{_lambda_.1} parent=11 // pred_check_branch
          %311 = sbr.rel (%p309) target = $region32
        $region31: #{_lambda_.1} parent=11 // pred_region
          _
        $region32: #{_lambda_.1} parent=11 // pred_fallthru
          _
        // Predicated region
        $region33: #{_lambda_.1} parent=11 // pred_check
          %p312 = pneg %p172
        $region34: #{_lambda_.1} parent=11 // pred_check_branch
          %314 = sbr.rel (%p312) target = $region36
        $region35: #{_lambda_.1} parent=11 // pred_region
          _
        $region36: #{_lambda_.1} parent=11 // pred_fallthru
          _
        // Predicated region
        $region37: #{_lambda_.1} parent=11 // pred_check
          %p315 = pneg %p193
        $region38: #{_lambda_.1} parent=11 // pred_check_branch
          %317 = sbr.rel (%p315) target = $region40
        $region39: #{_lambda_.1} parent=11 // pred_region
          _
        $region40: #{_lambda_.1} parent=11 // pred_fallthru
          _
        // Predicated region
        $region41: #{_lambda_.1} parent=11 // pred_check
          %p318 = pneg %p214
        $region42: #{_lambda_.1} parent=11 // pred_check_branch
          %320 = sbr.rel (%p318) target = $region44
        $region43: #{_lambda_.1} parent=11 // pred_region
          _
        $region44: #{_lambda_.1} parent=11 // pred_fallthru
          _
        // Predicated region
        $region45: #{_lambda_.1} parent=11 // pred_check
          %p321 = pneg %p235
        $region46: #{_lambda_.1} parent=11 // pred_check_branch
          %323 = sbr.rel (%p321) target = $region48
        $region47: #{_lambda_.1} parent=11 // pred_region
          _
        $region48: #{_lambda_.1} parent=11 // pred_fallthru
          _
        // Predicated region
        $region49: #{_lambda_.1} parent=11 // pred_check
          %p324 = pneg %p256
        $region50: #{_lambda_.1} parent=11 // pred_check_branch
          %326 = sbr.rel (%p324) target = $region52
        $region51: #{_lambda_.1} parent=11 // pred_region
          _
        $region52: #{_lambda_.1} parent=11 // pred_fallthru
          _
      $region12: #{_lambda_.1} parent=5 // pred_fallthru
        _
      %p327 = scmp.lt.s32.totalorder %s20, 2
      // Predicated region
      $region53: #{_lambda_.1} parent=5 // pred_check
        %p328 = pneg %p327
      $region54: #{_lambda_.1} parent=5 // pred_check_branch
        %330 = sbr.rel (%p328) target = $region56
      $region55: #{_lambda_.1} parent=5 // pred_region
        // Predicated region
        $region57: #{_lambda_.1} parent=55 // pred_check
          %p331 = pneg %p40
        $region58: #{_lambda_.1} parent=55 // pred_check_branch
          %333 = sbr.rel (%p331) target = $region60
        $region59: #{_lambda_.1} parent=55 // pred_region
          %s334 = smul.u32 2, %s20
          %p335 = scmp.lt.s32.totalorder %s334, 3
          %s336 = scalar_select %p335, %s334, 3
          %s337 = smul.addr %s336, 2
          %s338 = smul.addr %s337, 8
          %s339 = scalar_lea.vmem %s0, %s338
          %s340 = smul.u32 2, %s20
        $region60: #{_lambda_.1} parent=55 // pred_fallthru
          _
      $region56: #{_lambda_.1} parent=5 // pred_fallthru
        _
      %p341 = scmp.le.s32.totalorder 1, %s20
      %p342 = scmp.lt.s32.totalorder %s20, 3
      %p343 = pnand %p341, %p342
      %p344 = pneg %p343
      // Predicated region
      $region61: #{_lambda_.1} parent=5 // pred_check
        _
      $region62: #{_lambda_.1} parent=5 // pred_check_branch
        %346 = sbr.rel (%p343) target = $region64
      $region63: #{_lambda_.1} parent=5 // pred_region
        %s347 = ssub.s32 %s20, 1
        %s348 = smul.u32 2, %s25
        %p349 = scmp.lt.s32.totalorder %s348, 3
        %s350 = scalar_select %p349, %s348, 3
        %s351 = smul.addr %s350, 2
        %s352 = smul.addr %s351, 8
        %s353 = scalar_lea.vmem %s0, %s352
        %p354 = pneg %p46
        %p355 = pneg %p43
        %p356 = pneg %p67
        %p357 = pneg %p64
        %p358 = pneg %p88
        %p359 = pneg %p85
        %p360 = pneg %p109
        %p361 = pneg %p106
        %p362 = pneg %p130
        %p363 = pneg %p127
        %p364 = pneg %p151
        %p365 = pneg %p148
        %p366 = pneg %p172
        %p367 = pneg %p169
        %p368 = pneg %p193
        %p369 = pneg %p190
        %p370 = pneg %p214
        %p371 = pneg %p211
        %p372 = pneg %p235
        %p373 = pneg %p232
        %p374 = pneg %p256
        %p375 = pneg %p253
        %p376 = pneg %p282
        %p377 = pneg %p279
        %s378 = sand.u32 %s269, 1
        %s379 = scalar_lea.sflag [#allocation9], %s378
        %s380 = sand.u32 %s269, 1
        %s381 = smul.addr %s380, 8
        %s382 = scalar_lea.vmem [#allocation8], %s381
        %s383 = smul.u32 2, %s25
        %p384 = scmp.lt.s32.totalorder %s383, 3
        %s385 = scalar_select %p384, %s383, 3
        %s386 = smul.addr %s385, 2
        %s387 = smul.addr %s386, 8
        %s388 = scalar_lea.vmem %s0, %s387
        %s389 = smul.u32 2, %s25
        %s390 = smul.u32 2, %s25
        %v391 = vld [vmem:[%s388] sm:$0xff]
        %v392 = vld [vmem:[%s388 + $0x8] sm:$0xff]
        %v393 = vld [vmem:[%s388 + $0x10] sm:$0xff]
        %v394 = vld [vmem:[%s388 + $0x18] sm:$0xff]
        %vm395 = vcmask 123904
        %396 = vst.msk [vmem:[#allocation2] sm:$0x3] %vm395, 0.0
        %397 = vst.msk [vmem:[#allocation2 + $0x18] sm:$0x3] %vm395, 0.0
        %vm398 = vcmask 130048
        %399 = vst.msk [vmem:[#allocation2 + $0x2] sm:$0xff] %vm398, %v391
        %400 = vst.msk [vmem:[#allocation2 + $0xa] sm:$0xff] %vm398, %v392
        %401 = vst.msk [vmem:[#allocation2 + $0x1a] sm:$0xff] %vm398, %v393
        %402 = vst.msk [vmem:[#allocation2 + $0x22] sm:$0xff] %vm398, %v394
        %v403 = vld [vmem:[#allocation2] sm:$0xff]
        %v404 = vld [vmem:[#allocation2 + $0x8] sm:$0xff]
        %v405 = vld [vmem:[#allocation2 + $0x18] sm:$0xff]
        %v406 = vld [vmem:[#allocation2 + $0x20] sm:$0xff]
        %v407 = vld [vmem:[#allocation2 + $0x1] sm:$0xff]
        %v408 = vld [vmem:[#allocation2 + $0x9] sm:$0xff]
        %v409 = vld [vmem:[#allocation2 + $0x19] sm:$0xff]
        %v410 = vld [vmem:[#allocation2 + $0x21] sm:$0xff]
        %v411 = vld [vmem:[#allocation2 + $0x2] sm:$0xff]
        %v412 = vld [vmem:[#allocation2 + $0xa] sm:$0xff]
        %v413 = vld [vmem:[#allocation2 + $0x1a] sm:$0xff]
        %v414 = vld [vmem:[#allocation2 + $0x22] sm:$0xff]
        %419 = vrot.lane.b32.xlu0 %v407, 16
        %v420 = vpop.permute.xlu0 %419
        %421 = vrot.lane.b32.xlu0 %v408, 16
        %v422 = vpop.permute.xlu0 %421
        %423 = vrot.lane.b32.xlu0 %v409, 16
        %v424 = vpop.permute.xlu0 %423
        %425 = vrot.lane.b32.xlu0 %v410, 16
        %v426 = vpop.permute.xlu0 %425
        %435 = vrot.lane.b32.xlu0 %v411, 32
        %v436 = vpop.permute.xlu0 %435
        %437 = vrot.lane.b32.xlu0 %v412, 32
        %v438 = vpop.permute.xlu0 %437
        %439 = vrot.lane.b32.xlu0 %v413, 32
        %v440 = vpop.permute.xlu0 %439
        %441 = vrot.lane.b32.xlu0 %v414, 32
        %v442 = vpop.permute.xlu0 %441
        %v447 = vsel %vm398, %v403, %v420
        %v448 = vsel %vm398, %v404, %v422
        %v449 = vsel %vm398, %v405, %v424
        %v450 = vsel %vm398, %v406, %v426
        %vm451 = vcmask 261120
        %v452 = vsel %vm451, %v447, %v436
        %v453 = vsel %vm451, %v448, %v438
        %v454 = vsel %vm451, %v449, %v440
        %v455 = vsel %vm451, %v450, %v442
        %v456 = vld [vmem:[%s1] sm:$0xff]
        %v457 = vld [vmem:[%s1 + $0x8] sm:$0xff]
        %v458 = vld [vmem:[%s1 + $0x10] sm:$0xff]
        %v459 = vld [vmem:[%s1 + $0x18] sm:$0xff]
        %v460 = vld [vmem:[%s1 + $0x20] sm:$0xff]
        %v461 = vld [vmem:[%s1 + $0x28] sm:$0xff]
        %v462 = vld [vmem:[%s2] sm:$0x1]
        %v464 = vperm.slane %v462, 0
        %vm466 = vcmask 392192
        %v468 = vsel %vm466, %v452, 0
        %v471 = vsel %vm466, %v453, 0
        %v474 = vsel %vm466, %v454, 0
        %v477 = vsel %vm466, %v455, 0
        %479 = vmatpush.msra.mxu0 0.0
        %480 = vmatpush.msra.mxu0 0.0
        %481 = vmatpush.msra.mxu0 0.0
        %482 = vmatpush.msra.mxu0 0.0
        %483 = vmatpush.msra.mxu0 0.0
        %484 = vmatpush.msra.mxu0 0.0
        %485 = vmatpush.msra.mxu0 0.0
        %486 = vmatpush.msra.mxu0 0.0
        %487 = vmatpush.msra.mxu0 0.0
        %488 = vmatpush.msra.mxu0 0.0
        %489 = vmatpush.msra.mxu0 %v461
        %490 = vmatpush.msra.mxu0 %v460
        %491 = vmatpush.msra.mxu0 %v459
        %492 = vmatpush.msra.mxu0 %v458
        %493 = vmatpush.msra.mxu0 %v457
        %494 = vmatpush.msra.mxu0 %v456
        %495 = vmatmul.f32.gmra.mxu0 %v468
        %v496 = vpop.f32.mrf.mxu0
        %v497 = vadd.f32 %v464, %v496
        %498 = vmatmul.f32.gmra.mxu0 %v471
        %v499 = vpop.f32.mrf.mxu0
        %v500 = vadd.f32 %v464, %v499
        %501 = vmatmul.f32.gmra.mxu0 %v474
        %v502 = vpop.f32.mrf.mxu0
        %v503 = vadd.f32 %v464, %v502
        %504 = vmatmul.f32.gmra.mxu0 %v477
        %v505 = vpop.f32.mrf.mxu0
        %v506 = vadd.f32 %v464, %v505
        %507 = vdwg.mxu0
        %vm508 = vcmask 517120
        %509 = vst.msk [vmem:[#allocation3] sm:$0x3] %vm508, 0.0
        %510 = vst.msk [vmem:[#allocation3 + $0x18] sm:$0x3] %vm508, 0.0
        %vm511 = vcmask 523264
        %512 = vst.msk [vmem:[#allocation3 + $0x2] sm:$0xff] %vm511, %v497
        %513 = vst.msk [vmem:[#allocation3 + $0xa] sm:$0xff] %vm511, %v500
        %514 = vst.msk [vmem:[#allocation3 + $0x1a] sm:$0xff] %vm511, %v503
        %515 = vst.msk [vmem:[#allocation3 + $0x22] sm:$0xff] %vm511, %v506
        %v516 = vld [vmem:[#allocation3] sm:$0xff]
        %v517 = vld [vmem:[#allocation3 + $0x8] sm:$0xff]
        %v518 = vld [vmem:[#allocation3 + $0x18] sm:$0xff]
        %v519 = vld [vmem:[#allocation3 + $0x20] sm:$0xff]
        %v520 = vld [vmem:[#allocation3 + $0x1] sm:$0xff]
        %v521 = vld [vmem:[#allocation3 + $0x9] sm:$0xff]
        %v522 = vld [vmem:[#allocation3 + $0x19] sm:$0xff]
        %v523 = vld [vmem:[#allocation3 + $0x21] sm:$0xff]
        %v524 = vld [vmem:[#allocation3 + $0x2] sm:$0xff]
        %v525 = vld [vmem:[#allocation3 + $0xa] sm:$0xff]
        %v526 = vld [vmem:[#allocation3 + $0x1a] sm:$0xff]
        %v527 = vld [vmem:[#allocation3 + $0x22] sm:$0xff]
        %532 = vrot.lane.b32.xlu0 %v520, 64
        %v533 = vpop.permute.xlu0 %532
        %534 = vrot.lane.b32.xlu0 %v521, 64
        %v535 = vpop.permute.xlu0 %534
        %536 = vrot.lane.b32.xlu0 %v522, 64
        %v537 = vpop.permute.xlu0 %536
        %538 = vrot.lane.b32.xlu0 %v523, 64
        %v539 = vpop.permute.xlu0 %538
        %v544 = vsel %vm511, %v516, %v533
        %v545 = vsel %vm511, %v517, %v535
        %v546 = vsel %vm511, %v518, %v537
        %v547 = vsel %vm511, %v519, %v539
        %v548 = vld [vmem:[%s3] sm:$0xff]
        %v549 = vld [vmem:[%s3 + $0x8] sm:$0xff]
        %v550 = vld [vmem:[%s3 + $0x10] sm:$0xff]
        %v551 = vld [vmem:[%s3 + $0x18] sm:$0xff]
        %v552 = vld [vmem:[%s3 + $0x20] sm:$0xff]
        %v553 = vld [vmem:[%s3 + $0x28] sm:$0xff]
        %v554 = vld [vmem:[%s3 + $0x30] sm:$0xff]
        %v555 = vld [vmem:[%s3 + $0x38] sm:$0xff]
        %v556 = vld [vmem:[%s3 + $0x40] sm:$0xff]
        %v557 = vld [vmem:[%s3 + $0x48] sm:$0xff]
        %v558 = vld [vmem:[%s3 + $0x50] sm:$0xff]
        %v559 = vld [vmem:[%s3 + $0x58] sm:$0xff]
        %v560 = vld [vmem:[%s3 + $0x60] sm:$0xff]
        %v561 = vld [vmem:[%s3 + $0x68] sm:$0xff]
        %v562 = vld [vmem:[%s3 + $0x70] sm:$0xff]
        %v563 = vld [vmem:[%s3 + $0x78] sm:$0xff]
        %v564 = vld [vmem:[%s3 + $0x80] sm:$0xff]
        %v565 = vld [vmem:[%s3 + $0x88] sm:$0xff]
        %v566 = vld [vmem:[%s3 + $0x90] sm:$0xff]
        %v567 = vld [vmem:[%s3 + $0x98] sm:$0xff]
        %v568 = vld [vmem:[%s3 + $0xa0] sm:$0xff]
        %v569 = vld [vmem:[%s3 + $0xa8] sm:$0xff]
        %v570 = vld [vmem:[%s3 + $0xb0] sm:$0xff]
        %v571 = vld [vmem:[%s3 + $0xb8] sm:$0xff]
        %v572 = vld [vmem:[%s4] sm:$0x1]
        %v574 = vperm.slane %v572, 0
        %v577 = vsel %vm511, %v524, 0
        %v580 = vsel %vm511, %v525, 0
        %v583 = vsel %vm511, %v526, 0
        %v586 = vsel %vm511, %v527, 0
        %588 = vmatpush.msra.mxu0 %v563
        %589 = vmatpush.msra.mxu0 %v562
        %590 = vmatpush.msra.mxu0 %v561
        %591 = vmatpush.msra.mxu0 %v560
        %592 = vmatpush.msra.mxu0 %v559
        %593 = vmatpush.msra.mxu0 %v558
        %594 = vmatpush.msra.mxu0 %v557
        %595 = vmatpush.msra.mxu0 %v556
        %596 = vmatpush.msra.mxu0 %v555
        %597 = vmatpush.msra.mxu0 %v554
        %598 = vmatpush.msra.mxu0 %v553
        %599 = vmatpush.msra.mxu0 %v552
        %600 = vmatpush.msra.mxu0 %v551
        %601 = vmatpush.msra.mxu0 %v550
        %602 = vmatpush.msra.mxu0 %v549
        %603 = vmatpush.msra.mxu0 %v548
        %604 = vmatmul.f32.gmra.mxu0 %v544
        %v605 = vpop.f32.mrf.mxu0
        %v606 = vadd.f32 %v574, %v605
        %607 = vmatmul.f32.gmra.mxu0 %v545
        %v608 = vpop.f32.mrf.mxu0
        %v609 = vadd.f32 %v574, %v608
        %610 = vmatmul.f32.gmra.mxu0 %v546
        %v611 = vpop.f32.mrf.mxu0
        %v612 = vadd.f32 %v574, %v611
        %613 = vmatmul.f32.gmra.mxu0 %v547
        %v614 = vpop.f32.mrf.mxu0
        %v615 = vadd.f32 %v574, %v614
        %616 = vdwg.mxu0
        %617 = vmatpush.msra.mxu0 0.0
        %618 = vmatpush.msra.mxu0 0.0
        %619 = vmatpush.msra.mxu0 0.0
        %620 = vmatpush.msra.mxu0 0.0
        %621 = vmatpush.msra.mxu0 0.0
        %622 = vmatpush.msra.mxu0 0.0
        %623 = vmatpush.msra.mxu0 0.0
        %624 = vmatpush.msra.mxu0 0.0
        %625 = vmatpush.msra.mxu0 %v571
        %626 = vmatpush.msra.mxu0 %v570
        %627 = vmatpush.msra.mxu0 %v569
        %628 = vmatpush.msra.mxu0 %v568
        %629 = vmatpush.msra.mxu0 %v567
        %630 = vmatpush.msra.mxu0 %v566
        %631 = vmatpush.msra.mxu0 %v565
        %632 = vmatpush.msra.mxu0 %v564
        %633 = vmatmul.f32.gmra.mxu0 %v577
        %v634 = vpop.f32.mrf.mxu0
        %v635 = vadd.f32 %v606, %v634
        %636 = vmatmul.f32.gmra.mxu0 %v580
        %v637 = vpop.f32.mrf.mxu0
        %v638 = vadd.f32 %v609, %v637
        %639 = vmatmul.f32.gmra.mxu0 %v583
        %v640 = vpop.f32.mrf.mxu0
        %v641 = vadd.f32 %v612, %v640
        %642 = vmatmul.f32.gmra.mxu0 %v586
        %v643 = vpop.f32.mrf.mxu0
        %v644 = vadd.f32 %v615, %v643
        %645 = vdwg.mxu0
        %646 = vst.msk [vmem:[#allocation6] sm:$0xff] %vm511, %v635
        %647 = vst.msk [vmem:[#allocation6 + $0x8] sm:$0xff] %vm511, %v638
        %648 = vst.msk [vmem:[#allocation6 + $0x10] sm:$0xff] %vm511, %v641
        %649 = vst.msk [vmem:[#allocation6 + $0x18] sm:$0xff] %vm511, %v644
        %v650 = vld [vmem:[#allocation6] ss:$2 sm:$0xff]
        %s651 = scalar_lea.vmem [#allocation6], 16
        %v652 = vld [vmem:[%s651] ss:$2 sm:$0xff]
        %s653 = scalar_lea.vmem [#allocation6], 1
        %v654 = vld [vmem:[%s653] ss:$2 sm:$0xff]
        %s655 = scalar_lea.vmem [#allocation6], 17
        %v656 = vld [vmem:[%s655] ss:$2 sm:$0xff]
        %v657 = vmax.f32 %v650, %v654
        %v658 = vmax.f32 %v652, %v656
        %661 = vrot.lane.b32.xlu0 %v657, 124
        %v662 = vpop.permute.xlu0 %661
        %663 = vrot.lane.b32.xlu0 %v658, 124
        %v664 = vpop.permute.xlu0 %663
        %v667 = vmax.f32 %v657, %v662
        %v668 = vmax.f32 %v658, %v664
        %vm669 = vcmask 484352
        %670 = vst.msk [vmem:[#allocation4] sm:$0x3] %vm669, 0.0
        %671 = vst.msk [vmem:[#allocation4 + $0x10] sm:$0x3] %vm669, 0.0
        %vm672 = vcmask 490496
        %673 = vst.msk [vmem:[#allocation4 + $0x2] sm:$0xff] %vm672, %v667
        %674 = vst.msk [vmem:[#allocation4 + $0x12] sm:$0xff] %vm672, %v668
        %v675 = vld [vmem:[#allocation4] sm:$0xff]
        %v676 = vld [vmem:[#allocation4 + $0x10] sm:$0xff]
        %v677 = vld [vmem:[#allocation4 + $0x1] sm:$0xff]
        %v678 = vld [vmem:[#allocation4 + $0x11] sm:$0xff]
        %v679 = vld [vmem:[#allocation4 + $0x2] sm:$0xff]
        %v680 = vld [vmem:[#allocation4 + $0x12] sm:$0xff]
        %683 = vrot.lane.b32.xlu0 %v677, 60
        %v684 = vpop.permute.xlu0 %683
        %685 = vrot.lane.b32.xlu0 %v678, 60
        %v686 = vpop.permute.xlu0 %685
        %691 = vrot.lane.b32.xlu0 %v679, 120
        %v692 = vpop.permute.xlu0 %691
        %693 = vrot.lane.b32.xlu0 %v680, 120
        %v694 = vpop.permute.xlu0 %693
        %v697 = vsel %vm672, %v675, %v684
        %v698 = vsel %vm672, %v676, %v686
        %vm699 = vcmask 982016
        %v700 = vsel %vm699, %v697, %v692
        %v701 = vsel %vm699, %v698, %v694
        %v702 = vld [vmem:[%s5] sm:$0xff]
        %v703 = vld [vmem:[%s5 + $0x8] sm:$0xff]
        %v704 = vld [vmem:[%s5 + $0x10] sm:$0xff]
        %v705 = vld [vmem:[%s5 + $0x18] sm:$0xff]
        %v706 = vld [vmem:[%s5 + $0x20] sm:$0xff]
        %v707 = vld [vmem:[%s5 + $0x28] sm:$0xff]
        %v708 = vld [vmem:[%s5 + $0x30] sm:$0xff]
        %v709 = vld [vmem:[%s5 + $0x38] sm:$0xff]
        %v710 = vld [vmem:[%s5 + $0x40] sm:$0xff]
        %v711 = vld [vmem:[%s5 + $0x48] sm:$0xff]
        %v712 = vld [vmem:[%s5 + $0x50] sm:$0xff]
        %v713 = vld [vmem:[%s5 + $0x58] sm:$0xff]
        %v714 = vld [vmem:[%s5 + $0x60] sm:$0xff]
        %v715 = vld [vmem:[%s5 + $0x68] sm:$0xff]
        %v716 = vld [vmem:[%s5 + $0x70] sm:$0xff]
        %v717 = vld [vmem:[%s5 + $0x78] sm:$0xff]
        %v718 = vld [vmem:[%s5 + $0x80] sm:$0xff]
        %v719 = vld [vmem:[%s5 + $0x88] sm:$0xff]
        %v720 = vld [vmem:[%s5 + $0x90] sm:$0xff]
        %v721 = vld [vmem:[%s5 + $0x98] sm:$0xff]
        %v722 = vld [vmem:[%s5 + $0xa0] sm:$0xff]
        %v723 = vld [vmem:[%s5 + $0xa8] sm:$0xff]
        %v724 = vld [vmem:[%s5 + $0xb0] sm:$0xf]
        %v725 = vld [vmem:[%s6] sm:$0x1]
        %v727 = vperm.slane %v725, 0
        %vm729 = vcmask 424960
        %v730 = vsel %vm729, %v692, 0
        %v732 = vsel %vm729, %v694, 0
        %vm734 = vcmask 1043456
        %v736 = vsel %vm734, %v724, 0
        %738 = vmatpush.msra.mxu0 %v717
        %739 = vmatpush.msra.mxu0 %v716
        %740 = vmatpush.msra.mxu0 %v715
        %741 = vmatpush.msra.mxu0 %v714
        %742 = vmatpush.msra.mxu0 %v713
        %743 = vmatpush.msra.mxu0 %v712
        %744 = vmatpush.msra.mxu0 %v711
        %745 = vmatpush.msra.mxu0 %v710
        %746 = vmatpush.msra.mxu0 %v709
        %747 = vmatpush.msra.mxu0 %v708
        %748 = vmatpush.msra.mxu0 %v707
        %749 = vmatpush.msra.mxu0 %v706
        %750 = vmatpush.msra.mxu0 %v705
        %751 = vmatpush.msra.mxu0 %v704
        %752 = vmatpush.msra.mxu0 %v703
        %753 = vmatpush.msra.mxu0 %v702
        %754 = vmatmul.f32.gmra.mxu0 %v700
        %v755 = vpop.f32.mrf.mxu0
        %v756 = vadd.f32 %v727, %v755
        %757 = vmatmul.f32.gmra.mxu0 %v701
        %v758 = vpop.f32.mrf.mxu0
        %v759 = vadd.f32 %v727, %v758
        %760 = vdwg.mxu0
        %761 = vmatpush.msra.mxu0 0.0
        %762 = vmatpush.msra.mxu0 0.0
        %763 = vmatpush.msra.mxu0 0.0
        %764 = vmatpush.msra.mxu0 0.0
        %765 = vmatpush.msra.mxu0 0.0
        %766 = vmatpush.msra.mxu0 0.0
        %767 = vmatpush.msra.mxu0 0.0
        %768 = vmatpush.msra.mxu0 0.0
        %769 = vmatpush.msra.mxu0 0.0
        %770 = vmatpush.msra.mxu0 %v736
        %771 = vmatpush.msra.mxu0 %v723
        %772 = vmatpush.msra.mxu0 %v722
        %773 = vmatpush.msra.mxu0 %v721
        %774 = vmatpush.msra.mxu0 %v720
        %775 = vmatpush.msra.mxu0 %v719
        %776 = vmatpush.msra.mxu0 %v718
        %777 = vmatmul.f32.gmra.mxu0 %v730
        %v778 = vpop.f32.mrf.mxu0
        %v779 = vadd.f32 %v756, %v778
        %780 = vmatmul.f32.gmra.mxu0 %v732
        %v781 = vpop.f32.mrf.mxu0
        %v782 = vadd.f32 %v759, %v781
        %783 = vdwg.mxu0
        %784 = vst.msk [vmem:[#allocation5] sm:$0x3] %vm508, 0.0
        %785 = vst.msk [vmem:[#allocation5 + $0x10] sm:$0x3] %vm508, 0.0
        %786 = vst.msk [vmem:[#allocation5 + $0x2] sm:$0xff] %vm511, %v779
        %787 = vst.msk [vmem:[#allocation5 + $0x12] sm:$0xff] %vm511, %v782
        %v788 = vld [vmem:[#allocation5] sm:$0xff]
        %v789 = vld [vmem:[#allocation5 + $0x10] sm:$0xff]
        %v790 = vld [vmem:[#allocation5 + $0x1] sm:$0xff]
        %v791 = vld [vmem:[#allocation5 + $0x11] sm:$0xff]
        %v792 = vld [vmem:[#allocation5 + $0x2] sm:$0xff]
        %v793 = vld [vmem:[#allocation5 + $0x12] sm:$0xff]
        %796 = vrot.lane.b32.xlu0 %v790, 64
        %v797 = vpop.permute.xlu0 %796
        %798 = vrot.lane.b32.xlu0 %v791, 64
        %v799 = vpop.permute.xlu0 %798
        %v802 = vsel %vm511, %v788, %v797
        %v803 = vsel %vm511, %v789, %v799
        %v804 = vld [vmem:[%s7] sm:$0xff]
        %v805 = vld [vmem:[%s7 + $0x8] sm:$0xff]
        %v806 = vld [vmem:[%s7 + $0x10] sm:$0xff]
        %v807 = vld [vmem:[%s7 + $0x18] sm:$0xff]
        %v808 = vld [vmem:[%s7 + $0x20] sm:$0xff]
        %v809 = vld [vmem:[%s7 + $0x28] sm:$0xff]
        %v810 = vld [vmem:[%s7 + $0x30] sm:$0xff]
        %v811 = vld [vmem:[%s7 + $0x38] sm:$0xff]
        %v812 = vld [vmem:[%s7 + $0x40] sm:$0xff]
        %v813 = vld [vmem:[%s7 + $0x48] sm:$0xff]
        %v814 = vld [vmem:[%s7 + $0x50] sm:$0xff]
        %v815 = vld [vmem:[%s7 + $0x58] sm:$0xff]
        %v816 = vld [vmem:[%s7 + $0x60] sm:$0xff]
        %v817 = vld [vmem:[%s7 + $0x68] sm:$0xff]
        %v818 = vld [vmem:[%s7 + $0x70] sm:$0xff]
        %v819 = vld [vmem:[%s7 + $0x78] sm:$0xff]
        %v820 = vld [vmem:[%s7 + $0x80] sm:$0xff]
        %v821 = vld [vmem:[%s7 + $0x88] sm:$0xff]
        %v822 = vld [vmem:[%s7 + $0x90] sm:$0xff]
        %v823 = vld [vmem:[%s7 + $0x98] sm:$0xff]
        %v824 = vld [vmem:[%s7 + $0xa0] sm:$0xff]
        %v825 = vld [vmem:[%s7 + $0xa8] sm:$0xff]
        %v826 = vld [vmem:[%s7 + $0xb0] sm:$0xff]
        %v827 = vld [vmem:[%s7 + $0xb8] sm:$0xff]
        %v828 = vld [vmem:[%s8] sm:$0x1]
        %v830 = vperm.slane %v828, 0
        %v833 = vsel %vm511, %v792, 0
        %v836 = vsel %vm511, %v793, 0
        %838 = vmatpush.msra.mxu0 %v819
        %839 = vmatpush.msra.mxu0 %v818
        %840 = vmatpush.msra.mxu0 %v817
        %841 = vmatpush.msra.mxu0 %v816
        %842 = vmatpush.msra.mxu0 %v815
        %843 = vmatpush.msra.mxu0 %v814
        %844 = vmatpush.msra.mxu0 %v813
        %845 = vmatpush.msra.mxu0 %v812
        %846 = vmatpush.msra.mxu0 %v811
        %847 = vmatpush.msra.mxu0 %v810
        %848 = vmatpush.msra.mxu0 %v809
        %849 = vmatpush.msra.mxu0 %v808
        %850 = vmatpush.msra.mxu0 %v807
        %851 = vmatpush.msra.mxu0 %v806
        %852 = vmatpush.msra.mxu0 %v805
        %853 = vmatpush.msra.mxu0 %v804
        %854 = vmatmul.f32.gmra.mxu0 %v802
        %v855 = vpop.f32.mrf.mxu0
        %v856 = vadd.f32 %v830, %v855
        %857 = vmatmul.f32.gmra.mxu0 %v803
        %v858 = vpop.f32.mrf.mxu0
        %v859 = vadd.f32 %v830, %v858
        %860 = vdwg.mxu0
        %861 = vmatpush.msra.mxu0 0.0
        %862 = vmatpush.msra.mxu0 0.0
        %863 = vmatpush.msra.mxu0 0.0
        %864 = vmatpush.msra.mxu0 0.0
        %865 = vmatpush.msra.mxu0 0.0
        %866 = vmatpush.msra.mxu0 0.0
        %867 = vmatpush.msra.mxu0 0.0
        %868 = vmatpush.msra.mxu0 0.0
        %869 = vmatpush.msra.mxu0 %v827
        %870 = vmatpush.msra.mxu0 %v826
        %871 = vmatpush.msra.mxu0 %v825
        %872 = vmatpush.msra.mxu0 %v824
        %873 = vmatpush.msra.mxu0 %v823
        %874 = vmatpush.msra.mxu0 %v822
        %875 = vmatpush.msra.mxu0 %v821
        %876 = vmatpush.msra.mxu0 %v820
        %877 = vmatmul.f32.gmra.mxu0 %v833
        %v878 = vpop.f32.mrf.mxu0
        %v879 = vadd.f32 %v856, %v878
        %880 = vmatmul.f32.gmra.mxu0 %v836
        %v881 = vpop.f32.mrf.mxu0
        %v882 = vadd.f32 %v859, %v881
        %883 = vdwg.mxu0
        %884 = vst.msk [vmem:[#allocation7] sm:$0xff] %vm511, %v879
        %885 = vst.msk [vmem:[#allocation7 + $0x8] sm:$0xff] %vm511, %v882
        %v886 = vld [vmem:[#allocation7] ss:$2 sm:$0xff]
        %s887 = scalar_lea.vmem [#allocation7], 1
        %v888 = vld [vmem:[%s887] ss:$2 sm:$0xff]
        %v889 = vmax.f32 %v886, %v888
        %891 = vrot.lane.b32.xlu0 %v889, 120
        %v892 = vpop.permute.xlu0 %891
        %v894 = vmax.f32 %v889, %v892
        %v895 = vld [vmem:[%s9] sm:$0xff]
        %v896 = vld [vmem:[%s9 + $0x8] sm:$0xff]
        %v897 = vld [vmem:[%s9 + $0x10] sm:$0xff]
        %v898 = vld [vmem:[%s9 + $0x18] sm:$0xff]
        %v899 = vld [vmem:[%s9 + $0x20] sm:$0xff]
        %v900 = vld [vmem:[%s9 + $0x28] sm:$0xff]
        %v901 = vld [vmem:[%s9 + $0x30] sm:$0xff]
        %v902 = vld [vmem:[%s10] sm:$0x1]
        %v904 = vperm.slane %v902, 0
        %vm906 = vcmask 457728
        %v908 = vsel %vm906, %v894, 0
        %910 = vmatpush.msra.mxu0 0.0
        %911 = vmatpush.msra.mxu0 0.0
        %912 = vmatpush.msra.mxu0 0.0
        %913 = vmatpush.msra.mxu0 0.0
        %914 = vmatpush.msra.mxu0 0.0
        %915 = vmatpush.msra.mxu0 0.0
        %916 = vmatpush.msra.mxu0 0.0
        %917 = vmatpush.msra.mxu0 0.0
        %918 = vmatpush.msra.mxu0 0.0
        %919 = vmatpush.msra.mxu0 %v901
        %920 = vmatpush.msra.mxu0 %v900
        %921 = vmatpush.msra.mxu0 %v899
        %922 = vmatpush.msra.mxu0 %v898
        %923 = vmatpush.msra.mxu0 %v897
        %924 = vmatpush.msra.mxu0 %v896
        %925 = vmatpush.msra.mxu0 %v895
        %926 = vmatmul.f32.gmra.mxu0 %v908
        %v927 = vpop.f32.mrf.mxu0
        %v928 = vadd.f32 %v904, %v927
        %929 = vdwg.mxu0
        %vm930 = vcmask 257024
        %931 = vst.msk [vmem:[%s382] sm:$0xf] %vm930, %v928
        %s932 = scalar_lea.vmem %s382, 4 [#allocation8]
        %vm933 = vcmask 261124
        %934 = vst.msk [vmem:[%s932 - $0x4] sm:$0xf0] %vm933, %v928
        %s935 = sand.u32 %s269, 1
        %s936 = scalar_lea.sflag [#allocation9], %s935
        %s937 = sand.u32 %s269, 1
        %s938 = smul.addr %s937, 8
        %s939 = scalar_lea.vmem [#allocation8], %s938
        // Predicated region
        $region65: #{_lambda_.1} parent=63 // pred_check
          %p940 = pneg %p279
        $region66: #{_lambda_.1} parent=63 // pred_check_branch
          %942 = sbr.rel (%p940) target = $region68
        $region67: #{_lambda_.1} parent=63 // pred_region
          %s943 = smul.u32 2, %s25
          %945 = vsyncadd %s936, 0
          %s946 = smul.addr %s943, 4
          %s947 = scalar_lea.hbm %s11, %s946
          %s948 = sshll.u32 %s939, 4
          %s949 = int_to_ptr.vmem [resolvable:$true] %s948
          %s950 = sshll.u32 %s947, 4
          %s951 = int_to_ptr.hbm [resolvable:$true] %s950
          %956 = dma.vmem_to_hbm [thread:$0]  %s949, 128, %s951, %s936, 64, 64, 4
        $region68: #{_lambda_.1} parent=63 // pred_fallthru
          _
      $region64: #{_lambda_.1} parent=5 // pred_fallthru
        _
      %p957 = scmp.le.s32.totalorder 2, %s20
      // Predicated region
      $region69: #{_lambda_.1} parent=5 // pred_check
        %p958 = pneg %p957
      $region70: #{_lambda_.1} parent=5 // pred_check_branch
        %960 = sbr.rel (%p958) target = $region72
      $region71: #{_lambda_.1} parent=5 // pred_region
        %s961 = ssub.s32 %s20, 2
        // Predicated region
        $region73: #{_lambda_.1} parent=71 // pred_check
          %p962 = pneg %p285
        $region74: #{_lambda_.1} parent=71 // pred_check_branch
          %964 = sbr.rel (%p962) target = $region76
        $region75: #{_lambda_.1} parent=71 // pred_region
          %s965 = sand.u32 %s270, 1
          %s966 = scalar_lea.sflag [#allocation9], %s965
          %s967 = sand.u32 %s270, 1
          %s968 = smul.addr %s967, 8
          %s969 = scalar_lea.vmem [#allocation8], %s968
          %971 = dma.done %s966, 128
        $region76: #{_lambda_.1} parent=71 // pred_fallthru
          _
      $region72: #{_lambda_.1} parent=5 // pred_fallthru
        _
    $region6: #{_lambda_.1} parent=1 // loop_footer
      %s24 = sadd.s32 1, %s20
    $region7: #{_lambda_.1} parent=1 // loop_footer_branch
      %19 = sbr.rel target = $region3
    $region8: #{_lambda_.1} parent=1 // loop_exit
      _
    %972 = vsyncpa [#allocation9], 1
    %s973 = scalar_lea.sflag [#allocation9], 1
    %974 = vsyncpa %s973, 1

</llo_original>
